<compile_context>
chip_gen: v6e
topology: v6e:2x2x1
jax: 0.10.0
libtpu: 0.0.40
codegen_flags: <defaults>
</compile_context>

<pallas_src>
import jax
import jax.numpy as jnp
from jax import lax
from jax.experimental import pallas as pl
from jax.experimental.pallas import tpu as pltpu


# ---------------------------- fused Pallas kernel ----------------------------

def simple_cnn_kernel(patches_ref, wc_ref, bc_ref, w1_ref, b1_ref,
                      w2_ref, b2_ref, w3_ref, b3_ref, o_ref):
    """Whole forward pass in one kernel invocation (everything resident in VMEM).

    patches_ref: [4 * Hp*Wp * N, Kpad]  im2col patches for the four 2x2-pool
                 phases stacked along rows; row order (dh, dw, hp, wp, n),
                 column order (cin, kh, kw), K zero-padded to Kpad.
    wc_ref:      [Kpad, Cpad]   conv weight; out-channels zero-padded to 128.
    bc_ref:      [1, Cpad]      conv bias (zero-padded).
    w1_ref:      [Hp*Wp*Cpad, H1]  fc1 weight re-laid-out so the row block
                 p*Cpad:(p+1)*Cpad holds the fc1 columns that multiply pooled
                 spatial position p (zero rows for padded channels).
    b1_ref:      [1, H1]
    w2_ref:      [H1, H2], b2_ref: [1, H2]
    w3_ref:      [H2, OPAD] (out_features zero-padded to 128), b3_ref: [1, OPAD]
    o_ref:       [N, OPAD]  lane-dense output; caller slices [:, :10].
    """
    cpad = wc_ref.shape[1]
    rows = patches_ref.shape[0] // 4        # Hp*Wp*N pooled rows, order (hp, wp, n)
    n_pos = w1_ref.shape[0] // cpad         # Hp*Wp pooled spatial positions
    n_b = rows // n_pos                     # batch N

    # --- conv: ONE MXU matmul over all four pooling phases (bf16 in, f32 acc) ---
    conv = jnp.dot(patches_ref[...].astype(jnp.bfloat16),
                   wc_ref[...].astype(jnp.bfloat16),
                   preferred_element_type=jnp.float32)             # [4*rows, cpad]

    # --- 2x2 max-pool: the four phases are contiguous row blocks; bias + ReLU
    #     applied ONCE after the max (equivalent: max(relu(d+b)) == relu(max(d)+b)).
    pooled = jnp.maximum(
        jnp.maximum(conv[0 * rows:1 * rows], conv[1 * rows:2 * rows]),
        jnp.maximum(conv[2 * rows:3 * rows], conv[3 * rows:4 * rows]))
    pooled = jnp.maximum(pooled + bc_ref[...], 0.0)                # f32 elementwise

    # --- fc1 over torch's view(-1, N) layout (feature f = c*Hp*Wp + p):
    #     contract the per-position channel blocks and sum; the layout shuffle
    #     lives entirely in w1_ref, so no in-VMEM transpose/reshape is needed.
    pooled_bf = pooled.astype(jnp.bfloat16)
    w1 = w1_ref[...].astype(jnp.bfloat16)
    acc = jnp.dot(pooled_bf[0:n_b, :], w1[0:cpad, :],
                  preferred_element_type=jnp.float32)
    for p in range(1, n_pos):                                      # static, tiny (Hp*Wp)
        acc = acc + jnp.dot(pooled_bf[p * n_b:(p + 1) * n_b, :],
                            w1[p * cpad:(p + 1) * cpad, :],
                            preferred_element_type=jnp.float32)
    h1 = jnp.maximum(acc + b1_ref[...], 0.0)

    # --- fc2 -> ReLU -> fc3 (lane-dense 128-wide output store) ---
    h2 = jnp.maximum(
        jnp.dot(h1.astype(jnp.bfloat16), w2_ref[...].astype(jnp.bfloat16),
                preferred_element_type=jnp.float32) + b2_ref[...], 0.0)
    o_ref[...] = jnp.dot(h2.astype(jnp.bfloat16), w3_ref[...].astype(jnp.bfloat16),
                         preferred_element_type=jnp.float32) + b3_ref[...]


# ---------------- wrapper (glue: im2col stacking, weight re-layout) ----------------

def _round_up(v, m):
    return (v + m - 1) // m * m


def simple_cnn_forward(x, params):
    conv_w, conv_b, fc1_w, fc1_b, fc2_w, fc2_b, fc3_w, fc3_b = params
    N, Cin, H, W = x.shape
    Cout, _, KH, KW = conv_w.shape
    Hp, Wp = H // 2, W // 2
    n_pos = Hp * Wp
    feat = Cout * n_pos
    K = Cin * KH * KW

    KPAD = _round_up(K, 8)          # 27 -> 32
    CPAD = 128                      # lane-dense conv channels
    H1 = fc1_w.shape[0]
    H3 = fc3_w.shape[0]
    OPAD = 128                      # lane-dense final output

    # The module's `conv1.view(-1, conv1.size(0))` only feeds fc1 correctly when
    # batch == fc1.in_features (== Cout*Hp*Wp at this scale).
    assert fc1_w.shape[1] == feat and N == feat, (N, feat, fc1_w.shape)

    # glue: zero-pad (padding=1) and build ONE stacked im2col patch matrix.
    # TODO(synk): full in-kernel im2col from raw NCHW x is skipped (Cin=3-wide
    # lane layouts lower poorly); the four phase matrices are stacked into a
    # single kernel input instead, as recommended.
    xp = jnp.pad(x, ((0, 0), (0, 0), (1, 1), (1, 1)))
    taps = jnp.stack([xp[:, :, kh:kh + H, kw:kw + W]
                      for kh in range(KH) for kw in range(KW)], axis=-1)   # (N,Cin,H,W,9)
    pf = jnp.transpose(taps, (2, 3, 0, 1, 4)).reshape(H, W, N, K)          # cols (cin,kh,kw)
    patches = jnp.concatenate(
        [pf[dh::2, dw::2].reshape(n_pos * N, K) for dh in range(2) for dw in range(2)],
        axis=0)                                                            # rows (dh,dw,hp,wp,n)
    patches = jnp.pad(patches, ((0, 0), (0, KPAD - K)))

    # conv weight (Cout,Cin,KH,KW) -> (K, Cout), rows ordered (cin,kh,kw); pad.
    wc = jnp.transpose(conv_w, (1, 2, 3, 0)).reshape(K, Cout)
    wc = jnp.pad(wc, ((0, KPAD - K), (0, CPAD - Cout)))
    bc = jnp.pad(conv_b.reshape(1, Cout), ((0, 0), (0, CPAD - Cout)))

    # fc1 weight re-layout: column f = c*Hp*Wp + p  ->  row p*CPAD + c.
    w1r = fc1_w.T.reshape(Cout, n_pos, H1).transpose(1, 0, 2)              # [p, c, j]
    w1r = jnp.pad(w1r, ((0, 0), (0, CPAD - Cout), (0, 0))).reshape(n_pos * CPAD, H1)
    b1 = fc1_b.reshape(1, H1)

    w2 = fc2_w.T
    b2 = fc2_b.reshape(1, -1)
    w3 = jnp.pad(fc3_w.T, ((0, 0), (0, OPAD - H3)))
    b3 = jnp.pad(fc3_b.reshape(1, H3), ((0, 0), (0, OPAD - H3)))

    out_padded = pl.pallas_call(
        simple_cnn_kernel,
        out_shape=jax.ShapeDtypeStruct((N, OPAD), jnp.float32),
        in_specs=[pl.BlockSpec(memory_space=pltpu.MemorySpace.VMEM) for _ in range(9)],
        out_specs=pl.BlockSpec(memory_space=pltpu.MemorySpace.VMEM),
    )(patches, wc, bc, w1r, b1, w2, b2, w3, b3)

    return out_padded[:, :H3]


# ---------------- pure-JAX reference (for a sanity check) ----------------

def reference_forward(x, params):
    conv_w, conv_b, fc1_w, fc1_b, fc2_w, fc2_b, fc3_w, fc3_b = params
    y = lax.conv_general_dilated(x, conv_w, (1, 1), ((1, 1), (1, 1)),
                                 dimension_numbers=('NCHW', 'OIHW', 'NCHW'))
    y = jnp.maximum(y + conv_b.reshape(1, -1, 1, 1), 0.0)
    y = lax.reduce_window(y, -jnp.inf, lax.max, (1, 1, 2, 2), (1, 1, 2, 2), 'VALID')
    f = y.reshape(-1, x.shape[0])            # torch-style view(-1, N)
    h1 = jnp.maximum(f @ fc1_w.T + fc1_b, 0.0)
    h2 = jnp.maximum(h1 @ fc2_w.T + fc2_b, 0.0)
    return h2 @ fc3_w.T + fc3_b


if __name__ == "__main__":
    # batch must equal 16 * (H//2) * (W//2) so the module's view(-1, batch)
    # feeds fc1 with the right feature count (scaled-down analogue of 16*320*240).
    N, Cin, H, W = 64, 3, 4, 4
    Cout = 16
    feat = Cout * (H // 2) * (W // 2)   # = 64 = fc1 in_features at this scale

    key = jax.random.PRNGKey(0)
    ks = jax.random.split(key, 9)
    params = (
        0.10 * jax.random.normal(ks[0], (Cout, Cin, 3, 3), jnp.float32),  # conv1.weight
        0.10 * jax.random.normal(ks[1], (Cout,), jnp.float32),            # conv1.bias
        0.05 * jax.random.normal(ks[2], (512, feat), jnp.float32),        # fc1.weight
        0.05 * jax.random.normal(ks[3], (512,), jnp.float32),             # fc1.bias
        0.05 * jax.random.normal(ks[4], (64, 512), jnp.float32),          # fc2.weight
        0.05 * jax.random.normal(ks[5], (64,), jnp.float32),              # fc2.bias
        0.05 * jax.random.normal(ks[6], (10, 64), jnp.float32),           # fc3.weight
        0.05 * jax.random.normal(ks[7], (10,), jnp.float32),              # fc3.bias
    )
    x = jax.random.normal(ks[8], (N, Cin, H, W), jnp.float32)

    fwd = jax.jit(simple_cnn_forward)
    out = jax.block_until_ready(fwd(x, params))
    assert out.shape == (N, 10), out.shape

    ref = reference_forward(x, params)
    max_err = float(jnp.max(jnp.abs(out - ref)))
    # bf16 MXU operands with f32 accumulation: tolerance tightened 5x vs. the
    # previous 5e-2 (observed error is O(1e-3) at these magnitudes).
    assert jnp.allclose(out, ref, rtol=1e-2, atol=1e-2), max_err

    print("KERNEL_OK")
</pallas_src>

<mosaic_0001>
module attributes {stable_mosaic.version = 11 : i64} {
  func.func @simple_cnn_kernel(%arg0: memref<1024x32xf32, #tpu.memory_space<vmem>>, %arg1: memref<32x128xf32, #tpu.memory_space<vmem>>, %arg2: memref<1x128xf32, #tpu.memory_space<vmem>>, %arg3: memref<512x512xf32, #tpu.memory_space<vmem>>, %arg4: memref<1x512xf32, #tpu.memory_space<vmem>>, %arg5: memref<512x64xf32, #tpu.memory_space<vmem>>, %arg6: memref<1x64xf32, #tpu.memory_space<vmem>>, %arg7: memref<64x128xf32, #tpu.memory_space<vmem>>, %arg8: memref<1x128xf32, #tpu.memory_space<vmem>>, %arg9: memref<64x128xf32, #tpu.memory_space<vmem>>) attributes {dimension_semantics = [], scalar_prefetch = 0 : i64, scratch_operands = 0 : i64, tpu.core_type = #tpu.core_type<tc>} {
    %c0 = arith.constant 0 : index
    %c0_0 = arith.constant 0 : index
    %0 = vector.load %arg0[%c0, %c0_0] : memref<1024x32xf32, #tpu.memory_space<vmem>>, vector<1024x32xf32>
    %1 = arith.truncf %0 : vector<1024x32xf32> to vector<1024x32xbf16>
    %c0_1 = arith.constant 0 : index
    %c0_2 = arith.constant 0 : index
    %2 = vector.load %arg1[%c0_1, %c0_2] : memref<32x128xf32, #tpu.memory_space<vmem>>, vector<32x128xf32>
    %3 = arith.truncf %2 : vector<32x128xf32> to vector<32x128xbf16>
    %cst = arith.constant dense<0.000000e+00> : vector<1024x128xf32>
    %4 = tpu.matmul %1, %3, %cst {dimension_numbers = #tpu.dot_dimension_numbers<[1], [0], [0], [1], [0, 0, 1, 1], [], []>} : vector<1024x32xbf16>, vector<32x128xbf16>, vector<1024x128xf32> -> vector<1024x128xf32>
    %5 = vector.extract_strided_slice %4 {offsets = [0, 0], sizes = [256, 128], strides = [1, 1]} : vector<1024x128xf32> to vector<256x128xf32>
    %6 = vector.extract_strided_slice %4 {offsets = [256, 0], sizes = [256, 128], strides = [1, 1]} : vector<1024x128xf32> to vector<256x128xf32>
    %7 = arith.maximumf %5, %6 : vector<256x128xf32>
    %8 = vector.extract_strided_slice %4 {offsets = [512, 0], sizes = [256, 128], strides = [1, 1]} : vector<1024x128xf32> to vector<256x128xf32>
    %9 = vector.extract_strided_slice %4 {offsets = [768, 0], sizes = [256, 128], strides = [1, 1]} : vector<1024x128xf32> to vector<256x128xf32>
    %10 = arith.maximumf %8, %9 : vector<256x128xf32>
    %11 = arith.maximumf %7, %10 : vector<256x128xf32>
    %c0_3 = arith.constant 0 : index
    %c0_4 = arith.constant 0 : index
    %12 = vector.load %arg2[%c0_3, %c0_4] : memref<1x128xf32, #tpu.memory_space<vmem>>, vector<1x128xf32>
    %13 = vector.broadcast %12 : vector<1x128xf32> to vector<256x128xf32>
    %14 = arith.addf %11, %13 : vector<256x128xf32>
    %cst_5 = arith.constant 0.000000e+00 : f32
    %15 = vector.broadcast %cst_5 : f32 to vector<256x128xf32>
    %16 = arith.maximumf %14, %15 : vector<256x128xf32>
    %17 = arith.truncf %16 : vector<256x128xf32> to vector<256x128xbf16>
    %c0_6 = arith.constant 0 : index
    %c0_7 = arith.constant 0 : index
    %18 = vector.load %arg3[%c0_6, %c0_7] : memref<512x512xf32, #tpu.memory_space<vmem>>, vector<512x512xf32>
    %19 = arith.truncf %18 : vector<512x512xf32> to vector<512x512xbf16>
    %20 = vector.extract_strided_slice %17 {offsets = [0, 0], sizes = [64, 128], strides = [1, 1]} : vector<256x128xbf16> to vector<64x128xbf16>
    %21 = vector.extract_strided_slice %19 {offsets = [0, 0], sizes = [128, 512], strides = [1, 1]} : vector<512x512xbf16> to vector<128x512xbf16>
    %cst_8 = arith.constant dense<0.000000e+00> : vector<64x512xf32>
    %22 = tpu.matmul %20, %21, %cst_8 {dimension_numbers = #tpu.dot_dimension_numbers<[1], [0], [0], [1], [0, 0, 1, 1], [], []>} : vector<64x128xbf16>, vector<128x512xbf16>, vector<64x512xf32> -> vector<64x512xf32>
    %23 = vector.extract_strided_slice %17 {offsets = [64, 0], sizes = [64, 128], strides = [1, 1]} : vector<256x128xbf16> to vector<64x128xbf16>
    %24 = vector.extract_strided_slice %19 {offsets = [128, 0], sizes = [128, 512], strides = [1, 1]} : vector<512x512xbf16> to vector<128x512xbf16>
    %cst_9 = arith.constant dense<0.000000e+00> : vector<64x512xf32>
    %25 = tpu.matmul %23, %24, %cst_9 {dimension_numbers = #tpu.dot_dimension_numbers<[1], [0], [0], [1], [0, 0, 1, 1], [], []>} : vector<64x128xbf16>, vector<128x512xbf16>, vector<64x512xf32> -> vector<64x512xf32>
    %26 = arith.addf %22, %25 : vector<64x512xf32>
    %27 = vector.extract_strided_slice %17 {offsets = [128, 0], sizes = [64, 128], strides = [1, 1]} : vector<256x128xbf16> to vector<64x128xbf16>
    %28 = vector.extract_strided_slice %19 {offsets = [256, 0], sizes = [128, 512], strides = [1, 1]} : vector<512x512xbf16> to vector<128x512xbf16>
    %cst_10 = arith.constant dense<0.000000e+00> : vector<64x512xf32>
    %29 = tpu.matmul %27, %28, %cst_10 {dimension_numbers = #tpu.dot_dimension_numbers<[1], [0], [0], [1], [0, 0, 1, 1], [], []>} : vector<64x128xbf16>, vector<128x512xbf16>, vector<64x512xf32> -> vector<64x512xf32>
    %30 = arith.addf %26, %29 : vector<64x512xf32>
    %31 = vector.extract_strided_slice %17 {offsets = [192, 0], sizes = [64, 128], strides = [1, 1]} : vector<256x128xbf16> to vector<64x128xbf16>
    %32 = vector.extract_strided_slice %19 {offsets = [384, 0], sizes = [128, 512], strides = [1, 1]} : vector<512x512xbf16> to vector<128x512xbf16>
    %cst_11 = arith.constant dense<0.000000e+00> : vector<64x512xf32>
    %33 = tpu.matmul %31, %32, %cst_11 {dimension_numbers = #tpu.dot_dimension_numbers<[1], [0], [0], [1], [0, 0, 1, 1], [], []>} : vector<64x128xbf16>, vector<128x512xbf16>, vector<64x512xf32> -> vector<64x512xf32>
    %34 = arith.addf %30, %33 : vector<64x512xf32>
    %c0_12 = arith.constant 0 : index
    %c0_13 = arith.constant 0 : index
    %35 = vector.load %arg4[%c0_12, %c0_13] : memref<1x512xf32, #tpu.memory_space<vmem>>, vector<1x512xf32>
    %36 = vector.broadcast %35 : vector<1x512xf32> to vector<64x512xf32>
    %37 = arith.addf %34, %36 : vector<64x512xf32>
    %cst_14 = arith.constant 0.000000e+00 : f32
    %38 = vector.broadcast %cst_14 : f32 to vector<64x512xf32>
    %39 = arith.maximumf %37, %38 : vector<64x512xf32>
    %40 = arith.truncf %39 : vector<64x512xf32> to vector<64x512xbf16>
    %c0_15 = arith.constant 0 : index
    %c0_16 = arith.constant 0 : index
    %41 = vector.load %arg5[%c0_15, %c0_16] : memref<512x64xf32, #tpu.memory_space<vmem>>, vector<512x64xf32>
    %42 = arith.truncf %41 : vector<512x64xf32> to vector<512x64xbf16>
    %cst_17 = arith.constant dense<0.000000e+00> : vector<64x64xf32>
    %43 = tpu.matmul %40, %42, %cst_17 {dimension_numbers = #tpu.dot_dimension_numbers<[1], [0], [0], [1], [0, 0, 1, 1], [], []>} : vector<64x512xbf16>, vector<512x64xbf16>, vector<64x64xf32> -> vector<64x64xf32>
    %c0_18 = arith.constant 0 : index
    %c0_19 = arith.constant 0 : index
    %44 = vector.load %arg6[%c0_18, %c0_19] : memref<1x64xf32, #tpu.memory_space<vmem>>, vector<1x64xf32>
    %45 = vector.broadcast %44 : vector<1x64xf32> to vector<64x64xf32>
    %46 = arith.addf %43, %45 : vector<64x64xf32>
    %cst_20 = arith.constant 0.000000e+00 : f32
    %47 = vector.broadcast %cst_20 : f32 to vector<64x64xf32>
    %48 = arith.maximumf %46, %47 : vector<64x64xf32>
    %49 = arith.truncf %48 : vector<64x64xf32> to vector<64x64xbf16>
    %c0_21 = arith.constant 0 : index
    %c0_22 = arith.constant 0 : index
    %50 = vector.load %arg7[%c0_21, %c0_22] : memref<64x128xf32, #tpu.memory_space<vmem>>, vector<64x128xf32>
    %51 = arith.truncf %50 : vector<64x128xf32> to vector<64x128xbf16>
    %cst_23 = arith.constant dense<0.000000e+00> : vector<64x128xf32>
    %52 = tpu.matmul %49, %51, %cst_23 {dimension_numbers = #tpu.dot_dimension_numbers<[1], [0], [0], [1], [0, 0, 1, 1], [], []>} : vector<64x64xbf16>, vector<64x128xbf16>, vector<64x128xf32> -> vector<64x128xf32>
    %c0_24 = arith.constant 0 : index
    %c0_25 = arith.constant 0 : index
    %53 = vector.load %arg8[%c0_24, %c0_25] : memref<1x128xf32, #tpu.memory_space<vmem>>, vector<1x128xf32>
    %54 = vector.broadcast %53 : vector<1x128xf32> to vector<64x128xf32>
    %55 = arith.addf %52, %54 : vector<64x128xf32>
    %c0_26 = arith.constant 0 : index
    %c0_27 = arith.constant 0 : index
    %56 = vector.load %arg9[%c0_26, %c0_27] : memref<64x128xf32, #tpu.memory_space<vmem>>, vector<64x128xf32>
    tpu.vector_store %arg9[%c0_26, %c0_27], %55 {strides = array<i32>} : memref<64x128xf32, #tpu.memory_space<vmem>>, vector<64x128xf32>,
    return
  }
}

</mosaic_0001>

<llo_original>
// kernel: simple_cnn_forward.1
$region0: #{simple_cnn_forward.1}
  #allocation0 [shape = 'u32[]', space=smem, size = 0x4, offset = 0x4, fixed_abs, tag = 'smem constant byte address 0x4 - core index']
  #allocation1 [shape = 'u32[144,128]{1,0:T(1,128)}', space=vmem, size = 0x12000, scoped, tag = 'internal scratch']
  %s0 = inlined_call_operand.vmem [shape: f32[1024,32], index: 0, kind: input, shape index: {}]
  %s1 = inlined_call_operand.vmem [shape: f32[32,128], index: 1, kind: input, shape index: {}]
  %s2 = inlined_call_operand.vmem [shape: f32[1,128], index: 2, kind: input, shape index: {}]
  %s3 = inlined_call_operand.vmem [shape: f32[512,512], index: 3, kind: input, shape index: {}]
  %s4 = inlined_call_operand.vmem [shape: f32[1,512], index: 4, kind: input, shape index: {}]
  %s5 = inlined_call_operand.vmem [shape: f32[512,64], index: 5, kind: input, shape index: {}]
  %s6 = inlined_call_operand.vmem [shape: f32[1,64], index: 6, kind: input, shape index: {}]
  %s7 = inlined_call_operand.vmem [shape: f32[64,128], index: 7, kind: input, shape index: {}]
  %s8 = inlined_call_operand.vmem [shape: f32[1,128], index: 8, kind: input, shape index: {}]
  %s9 = inlined_call_operand.vmem [shape: f32[64,128], index: 9, kind: output, shape index: {}]
  %s10 = sld [smem:[#allocation0]]
  $region46: #{simple_cnn_forward.1} parent=0
    _
  %s12 = ssub.s32 1, %s10
  %s13 = scalar_select 0, %s12, %s10
  // Predicated region
  $region2: #{simple_cnn_forward.1} parent=0 // pred_check
    _
  $region3: #{simple_cnn_forward.1} parent=0 // pred_check_branch
    %15 = sbr.rel (0) target = $region5
  $region4: #{simple_cnn_forward.1} parent=0 // pred_region
    _
  $region5: #{simple_cnn_forward.1} parent=0 // pred_fallthru
    _
  // Predicated region
  $region6: #{simple_cnn_forward.1} parent=0 // pred_check
    _
  $region7: #{simple_cnn_forward.1} parent=0 // pred_check_branch
    %17 = sbr.rel (0) target = $region9
  $region8: #{simple_cnn_forward.1} parent=0 // pred_region
    _
  $region9: #{simple_cnn_forward.1} parent=0 // pred_fallthru
    _
  // Predicated region
  $region10: #{simple_cnn_forward.1} parent=0 // pred_check
    _
  $region11: #{simple_cnn_forward.1} parent=0 // pred_check_branch
    %19 = sbr.rel (0) target = $region13
  $region12: #{simple_cnn_forward.1} parent=0 // pred_region
    _
  $region13: #{simple_cnn_forward.1} parent=0 // pred_fallthru
    _
  // Predicated region
  $region14: #{simple_cnn_forward.1} parent=0 // pred_check
    _
  $region15: #{simple_cnn_forward.1} parent=0 // pred_check_branch
    %21 = sbr.rel (0) target = $region17
  $region16: #{simple_cnn_forward.1} parent=0 // pred_region
    _
  $region17: #{simple_cnn_forward.1} parent=0 // pred_fallthru
    _
  // Predicated region
  $region18: #{simple_cnn_forward.1} parent=0 // pred_check
    _
  $region19: #{simple_cnn_forward.1} parent=0 // pred_check_branch
    %23 = sbr.rel (0) target = $region21
  $region20: #{simple_cnn_forward.1} parent=0 // pred_region
    _
  $region21: #{simple_cnn_forward.1} parent=0 // pred_fallthru
    _
  // Predicated region
  $region22: #{simple_cnn_forward.1} parent=0 // pred_check
    _
  $region23: #{simple_cnn_forward.1} parent=0 // pred_check_branch
    %25 = sbr.rel (0) target = $region25
  $region24: #{simple_cnn_forward.1} parent=0 // pred_region
    _
  $region25: #{simple_cnn_forward.1} parent=0 // pred_fallthru
    _
  // Predicated region
  $region26: #{simple_cnn_forward.1} parent=0 // pred_check
    _
  $region27: #{simple_cnn_forward.1} parent=0 // pred_check_branch
    %27 = sbr.rel (0) target = $region29
  $region28: #{simple_cnn_forward.1} parent=0 // pred_region
    _
  $region29: #{simple_cnn_forward.1} parent=0 // pred_fallthru
    _
  // Predicated region
  $region30: #{simple_cnn_forward.1} parent=0 // pred_check
    _
  $region31: #{simple_cnn_forward.1} parent=0 // pred_check_branch
    %29 = sbr.rel (0) target = $region33
  $region32: #{simple_cnn_forward.1} parent=0 // pred_region
    _
  $region33: #{simple_cnn_forward.1} parent=0 // pred_fallthru
    _
  // Predicated region
  $region34: #{simple_cnn_forward.1} parent=0 // pred_check
    _
  $region35: #{simple_cnn_forward.1} parent=0 // pred_check_branch
    %31 = sbr.rel (0) target = $region37
  $region36: #{simple_cnn_forward.1} parent=0 // pred_region
    _
  $region37: #{simple_cnn_forward.1} parent=0 // pred_fallthru
    _
  %v33 = vld [vmem:[%s0] sm:$0xff]
  %v34 = vld [vmem:[%s0 + $0x8] sm:$0xff]
  %v35 = vld [vmem:[%s0 + $0x10] sm:$0xff]
  %v36 = vld [vmem:[%s0 + $0x18] sm:$0xff]
  %v37 = vld [vmem:[%s0 + $0x20] sm:$0xff]
  %v38 = vld [vmem:[%s0 + $0x28] sm:$0xff]
  %v39 = vld [vmem:[%s0 + $0x30] sm:$0xff]
  %v40 = vld [vmem:[%s0 + $0x38] sm:$0xff]
  %v41 = vld [vmem:[%s0 + $0x40] sm:$0xff]
  %v42 = vld [vmem:[%s0 + $0x48] sm:$0xff]
  %v43 = vld [vmem:[%s0 + $0x50] sm:$0xff]
  %v44 = vld [vmem:[%s0 + $0x58] sm:$0xff]
  %v45 = vld [vmem:[%s0 + $0x60] sm:$0xff]
  %v46 = vld [vmem:[%s0 + $0x68] sm:$0xff]
  %v47 = vld [vmem:[%s0 + $0x70] sm:$0xff]
  %v48 = vld [vmem:[%s0 + $0x78] sm:$0xff]
  %v49 = vld [vmem:[%s0 + $0x80] sm:$0xff]
  %v50 = vld [vmem:[%s0 + $0x88] sm:$0xff]
  %v51 = vld [vmem:[%s0 + $0x90] sm:$0xff]
  %v52 = vld [vmem:[%s0 + $0x98] sm:$0xff]
  %v53 = vld [vmem:[%s0 + $0xa0] sm:$0xff]
  %v54 = vld [vmem:[%s0 + $0xa8] sm:$0xff]
  %v55 = vld [vmem:[%s0 + $0xb0] sm:$0xff]
  %v56 = vld [vmem:[%s0 + $0xb8] sm:$0xff]
  %v57 = vld [vmem:[%s0 + $0xc0] sm:$0xff]
  %v58 = vld [vmem:[%s0 + $0xc8] sm:$0xff]
  %v59 = vld [vmem:[%s0 + $0xd0] sm:$0xff]
  %v60 = vld [vmem:[%s0 + $0xd8] sm:$0xff]
  %v61 = vld [vmem:[%s0 + $0xe0] sm:$0xff]
  %v62 = vld [vmem:[%s0 + $0xe8] sm:$0xff]
  %v63 = vld [vmem:[%s0 + $0xf0] sm:$0xff]
  %v64 = vld [vmem:[%s0 + $0xf8] sm:$0xff]
  %v65 = vld [vmem:[%s0 + $0x100] sm:$0xff]
  %v66 = vld [vmem:[%s0 + $0x108] sm:$0xff]
  %v67 = vld [vmem:[%s0 + $0x110] sm:$0xff]
  %v68 = vld [vmem:[%s0 + $0x118] sm:$0xff]
  %v69 = vld [vmem:[%s0 + $0x120] sm:$0xff]
  %v70 = vld [vmem:[%s0 + $0x128] sm:$0xff]
  %v71 = vld [vmem:[%s0 + $0x130] sm:$0xff]
  %v72 = vld [vmem:[%s0 + $0x138] sm:$0xff]
  %v73 = vld [vmem:[%s0 + $0x140] sm:$0xff]
  %v74 = vld [vmem:[%s0 + $0x148] sm:$0xff]
  %v75 = vld [vmem:[%s0 + $0x150] sm:$0xff]
  %v76 = vld [vmem:[%s0 + $0x158] sm:$0xff]
  %v77 = vld [vmem:[%s0 + $0x160] sm:$0xff]
  %v78 = vld [vmem:[%s0 + $0x168] sm:$0xff]
  %v79 = vld [vmem:[%s0 + $0x170] sm:$0xff]
  %v80 = vld [vmem:[%s0 + $0x178] sm:$0xff]
  %v81 = vld [vmem:[%s0 + $0x180] sm:$0xff]
  %v82 = vld [vmem:[%s0 + $0x188] sm:$0xff]
  %v83 = vld [vmem:[%s0 + $0x190] sm:$0xff]
  %v84 = vld [vmem:[%s0 + $0x198] sm:$0xff]
  %v85 = vld [vmem:[%s0 + $0x1a0] sm:$0xff]
  %v86 = vld [vmem:[%s0 + $0x1a8] sm:$0xff]
  %v87 = vld [vmem:[%s0 + $0x1b0] sm:$0xff]
  %v88 = vld [vmem:[%s0 + $0x1b8] sm:$0xff]
  %v89 = vld [vmem:[%s0 + $0x1c0] sm:$0xff]
  %v90 = vld [vmem:[%s0 + $0x1c8] sm:$0xff]
  %v91 = vld [vmem:[%s0 + $0x1d0] sm:$0xff]
  %v92 = vld [vmem:[%s0 + $0x1d8] sm:$0xff]
  %v93 = vld [vmem:[%s0 + $0x1e0] sm:$0xff]
  %v94 = vld [vmem:[%s0 + $0x1e8] sm:$0xff]
  %v95 = vld [vmem:[%s0 + $0x1f0] sm:$0xff]
  %v96 = vld [vmem:[%s0 + $0x1f8] sm:$0xff]
  %v97 = vld [vmem:[%s0 + $0x200] sm:$0xff]
  %v98 = vld [vmem:[%s0 + $0x208] sm:$0xff]
  %v99 = vld [vmem:[%s0 + $0x210] sm:$0xff]
  %v100 = vld [vmem:[%s0 + $0x218] sm:$0xff]
  %v101 = vld [vmem:[%s0 + $0x220] sm:$0xff]
  %v102 = vld [vmem:[%s0 + $0x228] sm:$0xff]
  %v103 = vld [vmem:[%s0 + $0x230] sm:$0xff]
  %v104 = vld [vmem:[%s0 + $0x238] sm:$0xff]
  %v105 = vld [vmem:[%s0 + $0x240] sm:$0xff]
  %v106 = vld [vmem:[%s0 + $0x248] sm:$0xff]
  %v107 = vld [vmem:[%s0 + $0x250] sm:$0xff]
  %v108 = vld [vmem:[%s0 + $0x258] sm:$0xff]
  %v109 = vld [vmem:[%s0 + $0x260] sm:$0xff]
  %v110 = vld [vmem:[%s0 + $0x268] sm:$0xff]
  %v111 = vld [vmem:[%s0 + $0x270] sm:$0xff]
  %v112 = vld [vmem:[%s0 + $0x278] sm:$0xff]
  %v113 = vld [vmem:[%s0 + $0x280] sm:$0xff]
  %v114 = vld [vmem:[%s0 + $0x288] sm:$0xff]
  %v115 = vld [vmem:[%s0 + $0x290] sm:$0xff]
  %v116 = vld [vmem:[%s0 + $0x298] sm:$0xff]
  %v117 = vld [vmem:[%s0 + $0x2a0] sm:$0xff]
  %v118 = vld [vmem:[%s0 + $0x2a8] sm:$0xff]
  %v119 = vld [vmem:[%s0 + $0x2b0] sm:$0xff]
  %v120 = vld [vmem:[%s0 + $0x2b8] sm:$0xff]
  %v121 = vld [vmem:[%s0 + $0x2c0] sm:$0xff]
  %v122 = vld [vmem:[%s0 + $0x2c8] sm:$0xff]
  %v123 = vld [vmem:[%s0 + $0x2d0] sm:$0xff]
  %v124 = vld [vmem:[%s0 + $0x2d8] sm:$0xff]
  %v125 = vld [vmem:[%s0 + $0x2e0] sm:$0xff]
  %v126 = vld [vmem:[%s0 + $0x2e8] sm:$0xff]
  %v127 = vld [vmem:[%s0 + $0x2f0] sm:$0xff]
  %v128 = vld [vmem:[%s0 + $0x2f8] sm:$0xff]
  %v129 = vld [vmem:[%s0 + $0x300] sm:$0xff]
  %v130 = vld [vmem:[%s0 + $0x308] sm:$0xff]
  %v131 = vld [vmem:[%s0 + $0x310] sm:$0xff]
  %v132 = vld [vmem:[%s0 + $0x318] sm:$0xff]
  %v133 = vld [vmem:[%s0 + $0x320] sm:$0xff]
  %v134 = vld [vmem:[%s0 + $0x328] sm:$0xff]
  %v135 = vld [vmem:[%s0 + $0x330] sm:$0xff]
  %v136 = vld [vmem:[%s0 + $0x338] sm:$0xff]
  %v137 = vld [vmem:[%s0 + $0x340] sm:$0xff]
  %v138 = vld [vmem:[%s0 + $0x348] sm:$0xff]
  %v139 = vld [vmem:[%s0 + $0x350] sm:$0xff]
  %v140 = vld [vmem:[%s0 + $0x358] sm:$0xff]
  %v141 = vld [vmem:[%s0 + $0x360] sm:$0xff]
  %v142 = vld [vmem:[%s0 + $0x368] sm:$0xff]
  %v143 = vld [vmem:[%s0 + $0x370] sm:$0xff]
  %v144 = vld [vmem:[%s0 + $0x378] sm:$0xff]
  %v145 = vld [vmem:[%s0 + $0x380] sm:$0xff]
  %v146 = vld [vmem:[%s0 + $0x388] sm:$0xff]
  %v147 = vld [vmem:[%s0 + $0x390] sm:$0xff]
  %v148 = vld [vmem:[%s0 + $0x398] sm:$0xff]
  %v149 = vld [vmem:[%s0 + $0x3a0] sm:$0xff]
  %v150 = vld [vmem:[%s0 + $0x3a8] sm:$0xff]
  %v151 = vld [vmem:[%s0 + $0x3b0] sm:$0xff]
  %v152 = vld [vmem:[%s0 + $0x3b8] sm:$0xff]
  %v153 = vld [vmem:[%s0 + $0x3c0] sm:$0xff]
  %v154 = vld [vmem:[%s0 + $0x3c8] sm:$0xff]
  %v155 = vld [vmem:[%s0 + $0x3d0] sm:$0xff]
  %v156 = vld [vmem:[%s0 + $0x3d8] sm:$0xff]
  %v157 = vld [vmem:[%s0 + $0x3e0] sm:$0xff]
  %v158 = vld [vmem:[%s0 + $0x3e8] sm:$0xff]
  %v159 = vld [vmem:[%s0 + $0x3f0] sm:$0xff]
  %v160 = vld [vmem:[%s0 + $0x3f8] sm:$0xff]
  %v161 = vpack.c.bf16 %v34, %v33
  %v162 = vpack.c.bf16 %v36, %v35
  %v163 = vpack.c.bf16 %v38, %v37
  %v164 = vpack.c.bf16 %v40, %v39
  %v165 = vpack.c.bf16 %v42, %v41
  %v166 = vpack.c.bf16 %v44, %v43
  %v167 = vpack.c.bf16 %v46, %v45
  %v168 = vpack.c.bf16 %v48, %v47
  %v169 = vpack.c.bf16 %v50, %v49
  %v170 = vpack.c.bf16 %v52, %v51
  %v171 = vpack.c.bf16 %v54, %v53
  %v172 = vpack.c.bf16 %v56, %v55
  %v173 = vpack.c.bf16 %v58, %v57
  %v174 = vpack.c.bf16 %v60, %v59
  %v175 = vpack.c.bf16 %v62, %v61
  %v176 = vpack.c.bf16 %v64, %v63
  %v177 = vpack.c.bf16 %v66, %v65
  %v178 = vpack.c.bf16 %v68, %v67
  %v179 = vpack.c.bf16 %v70, %v69
  %v180 = vpack.c.bf16 %v72, %v71
  %v181 = vpack.c.bf16 %v74, %v73
  %v182 = vpack.c.bf16 %v76, %v75
  %v183 = vpack.c.bf16 %v78, %v77
  %v184 = vpack.c.bf16 %v80, %v79
  %v185 = vpack.c.bf16 %v82, %v81
  %v186 = vpack.c.bf16 %v84, %v83
  %v187 = vpack.c.bf16 %v86, %v85
  %v188 = vpack.c.bf16 %v88, %v87
  %v189 = vpack.c.bf16 %v90, %v89
  %v190 = vpack.c.bf16 %v92, %v91
  %v191 = vpack.c.bf16 %v94, %v93
  %v192 = vpack.c.bf16 %v96, %v95
  %v193 = vpack.c.bf16 %v98, %v97
  %v194 = vpack.c.bf16 %v100, %v99
  %v195 = vpack.c.bf16 %v102, %v101
  %v196 = vpack.c.bf16 %v104, %v103
  %v197 = vpack.c.bf16 %v106, %v105
  %v198 = vpack.c.bf16 %v108, %v107
  %v199 = vpack.c.bf16 %v110, %v109
  %v200 = vpack.c.bf16 %v112, %v111
  %v201 = vpack.c.bf16 %v114, %v113
  %v202 = vpack.c.bf16 %v116, %v115
  %v203 = vpack.c.bf16 %v118, %v117
  %v204 = vpack.c.bf16 %v120, %v119
  %v205 = vpack.c.bf16 %v122, %v121
  %v206 = vpack.c.bf16 %v124, %v123
  %v207 = vpack.c.bf16 %v126, %v125
  %v208 = vpack.c.bf16 %v128, %v127
  %v209 = vpack.c.bf16 %v130, %v129
  %v210 = vpack.c.bf16 %v132, %v131
  %v211 = vpack.c.bf16 %v134, %v133
  %v212 = vpack.c.bf16 %v136, %v135
  %v213 = vpack.c.bf16 %v138, %v137
  %v214 = vpack.c.bf16 %v140, %v139
  %v215 = vpack.c.bf16 %v142, %v141
  %v216 = vpack.c.bf16 %v144, %v143
  %v217 = vpack.c.bf16 %v146, %v145
  %v218 = vpack.c.bf16 %v148, %v147
  %v219 = vpack.c.bf16 %v150, %v149
  %v220 = vpack.c.bf16 %v152, %v151
  %v221 = vpack.c.bf16 %v154, %v153
  %v222 = vpack.c.bf16 %v156, %v155
  %v223 = vpack.c.bf16 %v158, %v157
  %v224 = vpack.c.bf16 %v160, %v159
  %v225 = vld [vmem:[%s1] sm:$0xff]
  %v226 = vld [vmem:[%s1 + $0x8] sm:$0xff]
  %v227 = vld [vmem:[%s1 + $0x10] sm:$0xff]
  %v228 = vld [vmem:[%s1 + $0x18] sm:$0xff]
  %v229 = vpack.c.bf16 %v226, %v225
  %v230 = vpack.c.bf16 %v228, %v227
  %vm231 = vcmask 261120
  %v233 = vsel %vm231, %v161, 0
  %v236 = vsel %vm231, %v162, 0
  %v239 = vsel %vm231, %v163, 0
  %v242 = vsel %vm231, %v164, 0
  %v245 = vsel %vm231, %v165, 0
  %v248 = vsel %vm231, %v166, 0
  %v251 = vsel %vm231, %v167, 0
  %v254 = vsel %vm231, %v168, 0
  %v257 = vsel %vm231, %v169, 0
  %v260 = vsel %vm231, %v170, 0
  %v263 = vsel %vm231, %v171, 0
  %v266 = vsel %vm231, %v172, 0
  %v269 = vsel %vm231, %v173, 0
  %v272 = vsel %vm231, %v174, 0
  %v275 = vsel %vm231, %v175, 0
  %v278 = vsel %vm231, %v176, 0
  %v281 = vsel %vm231, %v177, 0
  %v284 = vsel %vm231, %v178, 0
  %v287 = vsel %vm231, %v179, 0
  %v290 = vsel %vm231, %v180, 0
  %v293 = vsel %vm231, %v181, 0
  %v296 = vsel %vm231, %v182, 0
  %v299 = vsel %vm231, %v183, 0
  %v302 = vsel %vm231, %v184, 0
  %v305 = vsel %vm231, %v185, 0
  %v308 = vsel %vm231, %v186, 0
  %v311 = vsel %vm231, %v187, 0
  %v314 = vsel %vm231, %v188, 0
  %v317 = vsel %vm231, %v189, 0
  %v320 = vsel %vm231, %v190, 0
  %v323 = vsel %vm231, %v191, 0
  %v326 = vsel %vm231, %v192, 0
  %v329 = vsel %vm231, %v193, 0
  %v332 = vsel %vm231, %v194, 0
  %v335 = vsel %vm231, %v195, 0
  %v338 = vsel %vm231, %v196, 0
  %v341 = vsel %vm231, %v197, 0
  %v344 = vsel %vm231, %v198, 0
  %v347 = vsel %vm231, %v199, 0
  %v350 = vsel %vm231, %v200, 0
  %v353 = vsel %vm231, %v201, 0
  %v356 = vsel %vm231, %v202, 0
  %v359 = vsel %vm231, %v203, 0
  %v362 = vsel %vm231, %v204, 0
  %v365 = vsel %vm231, %v205, 0
  %v368 = vsel %vm231, %v206, 0
  %v371 = vsel %vm231, %v207, 0
  %v374 = vsel %vm231, %v208, 0
  %v377 = vsel %vm231, %v209, 0
  %v380 = vsel %vm231, %v210, 0
  %v383 = vsel %vm231, %v211, 0
  %v386 = vsel %vm231, %v212, 0
  %v389 = vsel %vm231, %v213, 0
  %v392 = vsel %vm231, %v214, 0
  %v395 = vsel %vm231, %v215, 0
  %v398 = vsel %vm231, %v216, 0
  %v401 = vsel %vm231, %v217, 0
  %v404 = vsel %vm231, %v218, 0
  %v407 = vsel %vm231, %v219, 0
  %v410 = vsel %vm231, %v220, 0
  %v413 = vsel %vm231, %v221, 0
  %v416 = vsel %vm231, %v222, 0
  %v419 = vsel %vm231, %v223, 0
  %v422 = vsel %vm231, %v224, 0
  %424 = vmatprep.subr.bf16.mxu0 0
  %425 = vmatpush1.bf16.msra.mxu0 0
  %426 = vmatprep.subr.bf16.mxu0 0
  %427 = vmatpush1.bf16.msra.mxu0 0
  %428 = vmatprep.subr.bf16.mxu0 0
  %429 = vmatpush1.bf16.msra.mxu0 0
  %430 = vmatprep.subr.bf16.mxu0 0
  %431 = vmatpush1.bf16.msra.mxu0 0
  %432 = vmatprep.subr.bf16.mxu0 0
  %433 = vmatpush1.bf16.msra.mxu0 0
  %434 = vmatprep.subr.bf16.mxu0 0
  %435 = vmatpush1.bf16.msra.mxu0 0
  %436 = vmatprep.subr.bf16.mxu0 0
  %437 = vmatpush1.bf16.msra.mxu0 %v230
  %438 = vmatprep.subr.bf16.mxu0 0
  %439 = vmatpush1.bf16.msra.mxu0 %v229
  %440 = vmatprep.subr.bf16.mxu0 0
  %441 = vmatpush2.bf16.msra.mxu0 0
  %442 = vmatprep.subr.bf16.mxu0 0
  %443 = vmatpush2.bf16.msra.mxu0 0
  %444 = vmatprep.subr.bf16.mxu0 0
  %445 = vmatpush2.bf16.msra.mxu0 0
  %446 = vmatprep.subr.bf16.mxu0 0
  %447 = vmatpush2.bf16.msra.mxu0 0
  %448 = vmatprep.subr.bf16.mxu0 0
  %449 = vmatpush2.bf16.msra.mxu0 0
  %450 = vmatprep.subr.bf16.mxu0 0
  %451 = vmatpush2.bf16.msra.mxu0 0
  %452 = vmatprep.subr.bf16.mxu0 0
  %453 = vmatpush2.bf16.msra.mxu0 0
  %454 = vmatprep.subr.bf16.mxu0 0
  %455 = vmatpush2.bf16.msra.mxu0 0
  %456 = vmatprep.mubr.bf16.mxu0 0
  %457 = vmatmul.mubr.bf16.gmra.mxu0 %v233
  %v458 = vpop.f32.mrf.mxu0
  %v459 = vadd.f32 0.0, %v458
  %v460 = vpop.f32.mrf.mxu0
  %v461 = vpop.f32.mrf.mxu0
  %v462 = vadd.f32 0.0, %v461
  %v463 = vpop.f32.mrf.mxu0
  %464 = vmatprep.mubr.bf16.mxu0 0
  %465 = vmatmul.mubr.bf16.gmra.mxu0 %v236
  %v466 = vpop.f32.mrf.mxu0
  %v467 = vadd.f32 0.0, %v466
  %v468 = vpop.f32.mrf.mxu0
  %v469 = vpop.f32.mrf.mxu0
  %v470 = vadd.f32 0.0, %v469
  %v471 = vpop.f32.mrf.mxu0
  %472 = vmatprep.mubr.bf16.mxu0 0
  %473 = vmatmul.mubr.bf16.gmra.mxu0 %v239
  %v474 = vpop.f32.mrf.mxu0
  %v475 = vadd.f32 0.0, %v474
  %v476 = vpop.f32.mrf.mxu0
  %v477 = vpop.f32.mrf.mxu0
  %v478 = vadd.f32 0.0, %v477
  %v479 = vpop.f32.mrf.mxu0
  %480 = vmatprep.mubr.bf16.mxu0 0
  %481 = vmatmul.mubr.bf16.gmra.mxu0 %v242
  %v482 = vpop.f32.mrf.mxu0
  %v483 = vadd.f32 0.0, %v482
  %v484 = vpop.f32.mrf.mxu0
  %v485 = vpop.f32.mrf.mxu0
  %v486 = vadd.f32 0.0, %v485
  %v487 = vpop.f32.mrf.mxu0
  %488 = vmatprep.mubr.bf16.mxu0 0
  %489 = vmatmul.mubr.bf16.gmra.mxu0 %v245
  %v490 = vpop.f32.mrf.mxu0
  %v491 = vadd.f32 0.0, %v490
  %v492 = vpop.f32.mrf.mxu0
  %v493 = vpop.f32.mrf.mxu0
  %v494 = vadd.f32 0.0, %v493
  %v495 = vpop.f32.mrf.mxu0
  %496 = vmatprep.mubr.bf16.mxu0 0
  %497 = vmatmul.mubr.bf16.gmra.mxu0 %v248
  %v498 = vpop.f32.mrf.mxu0
  %v499 = vadd.f32 0.0, %v498
  %v500 = vpop.f32.mrf.mxu0
  %v501 = vpop.f32.mrf.mxu0
  %v502 = vadd.f32 0.0, %v501
  %v503 = vpop.f32.mrf.mxu0
  %504 = vmatprep.mubr.bf16.mxu0 0
  %505 = vmatmul.mubr.bf16.gmra.mxu0 %v251
  %v506 = vpop.f32.mrf.mxu0
  %v507 = vadd.f32 0.0, %v506
  %v508 = vpop.f32.mrf.mxu0
  %v509 = vpop.f32.mrf.mxu0
  %v510 = vadd.f32 0.0, %v509
  %v511 = vpop.f32.mrf.mxu0
  %512 = vmatprep.mubr.bf16.mxu0 0
  %513 = vmatmul.mubr.bf16.gmra.mxu0 %v254
  %v514 = vpop.f32.mrf.mxu0
  %v515 = vadd.f32 0.0, %v514
  %v516 = vpop.f32.mrf.mxu0
  %v517 = vpop.f32.mrf.mxu0
  %v518 = vadd.f32 0.0, %v517
  %v519 = vpop.f32.mrf.mxu0
  %520 = vmatprep.mubr.bf16.mxu0 0
  %521 = vmatmul.mubr.bf16.gmra.mxu0 %v257
  %v522 = vpop.f32.mrf.mxu0
  %v523 = vadd.f32 0.0, %v522
  %v524 = vpop.f32.mrf.mxu0
  %v525 = vpop.f32.mrf.mxu0
  %v526 = vadd.f32 0.0, %v525
  %v527 = vpop.f32.mrf.mxu0
  %528 = vmatprep.mubr.bf16.mxu0 0
  %529 = vmatmul.mubr.bf16.gmra.mxu0 %v260
  %v530 = vpop.f32.mrf.mxu0
  %v531 = vadd.f32 0.0, %v530
  %v532 = vpop.f32.mrf.mxu0
  %v533 = vpop.f32.mrf.mxu0
  %v534 = vadd.f32 0.0, %v533
  %v535 = vpop.f32.mrf.mxu0
  %536 = vmatprep.mubr.bf16.mxu0 0
  %537 = vmatmul.mubr.bf16.gmra.mxu0 %v263
  %v538 = vpop.f32.mrf.mxu0
  %v539 = vadd.f32 0.0, %v538
  %v540 = vpop.f32.mrf.mxu0
  %v541 = vpop.f32.mrf.mxu0
  %v542 = vadd.f32 0.0, %v541
  %v543 = vpop.f32.mrf.mxu0
  %544 = vmatprep.mubr.bf16.mxu0 0
  %545 = vmatmul.mubr.bf16.gmra.mxu0 %v266
  %v546 = vpop.f32.mrf.mxu0
  %v547 = vadd.f32 0.0, %v546
  %v548 = vpop.f32.mrf.mxu0
  %v549 = vpop.f32.mrf.mxu0
  %v550 = vadd.f32 0.0, %v549
  %v551 = vpop.f32.mrf.mxu0
  %552 = vmatprep.mubr.bf16.mxu0 0
  %553 = vmatmul.mubr.bf16.gmra.mxu0 %v269
  %v554 = vpop.f32.mrf.mxu0
  %v555 = vadd.f32 0.0, %v554
  %v556 = vpop.f32.mrf.mxu0
  %v557 = vpop.f32.mrf.mxu0
  %v558 = vadd.f32 0.0, %v557
  %v559 = vpop.f32.mrf.mxu0
  %560 = vmatprep.mubr.bf16.mxu0 0
  %561 = vmatmul.mubr.bf16.gmra.mxu0 %v272
  %v562 = vpop.f32.mrf.mxu0
  %v563 = vadd.f32 0.0, %v562
  %v564 = vpop.f32.mrf.mxu0
  %v565 = vpop.f32.mrf.mxu0
  %v566 = vadd.f32 0.0, %v565
  %v567 = vpop.f32.mrf.mxu0
  %568 = vmatprep.mubr.bf16.mxu0 0
  %569 = vmatmul.mubr.bf16.gmra.mxu0 %v275
  %v570 = vpop.f32.mrf.mxu0
  %v571 = vadd.f32 0.0, %v570
  %v572 = vpop.f32.mrf.mxu0
  %v573 = vpop.f32.mrf.mxu0
  %v574 = vadd.f32 0.0, %v573
  %v575 = vpop.f32.mrf.mxu0
  %576 = vmatprep.mubr.bf16.mxu0 0
  %577 = vmatmul.mubr.bf16.gmra.mxu0 %v278
  %v578 = vpop.f32.mrf.mxu0
  %v579 = vadd.f32 0.0, %v578
  %v580 = vpop.f32.mrf.mxu0
  %v581 = vpop.f32.mrf.mxu0
  %v582 = vadd.f32 0.0, %v581
  %v583 = vpop.f32.mrf.mxu0
  %584 = vmatprep.mubr.bf16.mxu0 0
  %585 = vmatmul.mubr.bf16.gmra.mxu0 %v281
  %v586 = vpop.f32.mrf.mxu0
  %v587 = vadd.f32 0.0, %v586
  %v588 = vpop.f32.mrf.mxu0
  %v589 = vpop.f32.mrf.mxu0
  %v590 = vadd.f32 0.0, %v589
  %v591 = vpop.f32.mrf.mxu0
  %592 = vmatprep.mubr.bf16.mxu0 0
  %593 = vmatmul.mubr.bf16.gmra.mxu0 %v284
  %v594 = vpop.f32.mrf.mxu0
  %v595 = vadd.f32 0.0, %v594
  %v596 = vpop.f32.mrf.mxu0
  %v597 = vpop.f32.mrf.mxu0
  %v598 = vadd.f32 0.0, %v597
  %v599 = vpop.f32.mrf.mxu0
  %600 = vmatprep.mubr.bf16.mxu0 0
  %601 = vmatmul.mubr.bf16.gmra.mxu0 %v287
  %v602 = vpop.f32.mrf.mxu0
  %v603 = vadd.f32 0.0, %v602
  %v604 = vpop.f32.mrf.mxu0
  %v605 = vpop.f32.mrf.mxu0
  %v606 = vadd.f32 0.0, %v605
  %v607 = vpop.f32.mrf.mxu0
  %608 = vmatprep.mubr.bf16.mxu0 0
  %609 = vmatmul.mubr.bf16.gmra.mxu0 %v290
  %v610 = vpop.f32.mrf.mxu0
  %v611 = vadd.f32 0.0, %v610
  %v612 = vpop.f32.mrf.mxu0
  %v613 = vpop.f32.mrf.mxu0
  %v614 = vadd.f32 0.0, %v613
  %v615 = vpop.f32.mrf.mxu0
  %616 = vmatprep.mubr.bf16.mxu0 0
  %617 = vmatmul.mubr.bf16.gmra.mxu0 %v293
  %v618 = vpop.f32.mrf.mxu0
  %v619 = vadd.f32 0.0, %v618
  %v620 = vpop.f32.mrf.mxu0
  %v621 = vpop.f32.mrf.mxu0
  %v622 = vadd.f32 0.0, %v621
  %v623 = vpop.f32.mrf.mxu0
  %624 = vmatprep.mubr.bf16.mxu0 0
  %625 = vmatmul.mubr.bf16.gmra.mxu0 %v296
  %v626 = vpop.f32.mrf.mxu0
  %v627 = vadd.f32 0.0, %v626
  %v628 = vpop.f32.mrf.mxu0
  %v629 = vpop.f32.mrf.mxu0
  %v630 = vadd.f32 0.0, %v629
  %v631 = vpop.f32.mrf.mxu0
  %632 = vmatprep.mubr.bf16.mxu0 0
  %633 = vmatmul.mubr.bf16.gmra.mxu0 %v299
  %v634 = vpop.f32.mrf.mxu0
  %v635 = vadd.f32 0.0, %v634
  %v636 = vpop.f32.mrf.mxu0
  %v637 = vpop.f32.mrf.mxu0
  %v638 = vadd.f32 0.0, %v637
  %v639 = vpop.f32.mrf.mxu0
  %640 = vmatprep.mubr.bf16.mxu0 0
  %641 = vmatmul.mubr.bf16.gmra.mxu0 %v302
  %v642 = vpop.f32.mrf.mxu0
  %v643 = vadd.f32 0.0, %v642
  %v644 = vpop.f32.mrf.mxu0
  %v645 = vpop.f32.mrf.mxu0
  %v646 = vadd.f32 0.0, %v645
  %v647 = vpop.f32.mrf.mxu0
  %648 = vmatprep.mubr.bf16.mxu0 0
  %649 = vmatmul.mubr.bf16.gmra.mxu0 %v305
  %v650 = vpop.f32.mrf.mxu0
  %v651 = vadd.f32 0.0, %v650
  %v652 = vpop.f32.mrf.mxu0
  %v653 = vpop.f32.mrf.mxu0
  %v654 = vadd.f32 0.0, %v653
  %v655 = vpop.f32.mrf.mxu0
  %656 = vmatprep.mubr.bf16.mxu0 0
  %657 = vmatmul.mubr.bf16.gmra.mxu0 %v308
  %v658 = vpop.f32.mrf.mxu0
  %v659 = vadd.f32 0.0, %v658
  %v660 = vpop.f32.mrf.mxu0
  %v661 = vpop.f32.mrf.mxu0
  %v662 = vadd.f32 0.0, %v661
  %v663 = vpop.f32.mrf.mxu0
  %664 = vmatprep.mubr.bf16.mxu0 0
  %665 = vmatmul.mubr.bf16.gmra.mxu0 %v311
  %v666 = vpop.f32.mrf.mxu0
  %v667 = vadd.f32 0.0, %v666
  %v668 = vpop.f32.mrf.mxu0
  %v669 = vpop.f32.mrf.mxu0
  %v670 = vadd.f32 0.0, %v669
  %v671 = vpop.f32.mrf.mxu0
  %672 = vmatprep.mubr.bf16.mxu0 0
  %673 = vmatmul.mubr.bf16.gmra.mxu0 %v314
  %v674 = vpop.f32.mrf.mxu0
  %v675 = vadd.f32 0.0, %v674
  %v676 = vpop.f32.mrf.mxu0
  %v677 = vpop.f32.mrf.mxu0
  %v678 = vadd.f32 0.0, %v677
  %v679 = vpop.f32.mrf.mxu0
  %680 = vmatprep.mubr.bf16.mxu0 0
  %681 = vmatmul.mubr.bf16.gmra.mxu0 %v317
  %v682 = vpop.f32.mrf.mxu0
  %v683 = vadd.f32 0.0, %v682
  %v684 = vpop.f32.mrf.mxu0
  %v685 = vpop.f32.mrf.mxu0
  %v686 = vadd.f32 0.0, %v685
  %v687 = vpop.f32.mrf.mxu0
  %688 = vmatprep.mubr.bf16.mxu0 0
  %689 = vmatmul.mubr.bf16.gmra.mxu0 %v320
  %v690 = vpop.f32.mrf.mxu0
  %v691 = vadd.f32 0.0, %v690
  %v692 = vpop.f32.mrf.mxu0
  %v693 = vpop.f32.mrf.mxu0
  %v694 = vadd.f32 0.0, %v693
  %v695 = vpop.f32.mrf.mxu0
  %696 = vmatprep.mubr.bf16.mxu0 0
  %697 = vmatmul.mubr.bf16.gmra.mxu0 %v323
  %v698 = vpop.f32.mrf.mxu0
  %v699 = vadd.f32 0.0, %v698
  %v700 = vpop.f32.mrf.mxu0
  %v701 = vpop.f32.mrf.mxu0
  %v702 = vadd.f32 0.0, %v701
  %v703 = vpop.f32.mrf.mxu0
  %704 = vmatprep.mubr.bf16.mxu0 0
  %705 = vmatmul.mubr.bf16.gmra.mxu0 %v326
  %v706 = vpop.f32.mrf.mxu0
  %v707 = vadd.f32 0.0, %v706
  %v708 = vpop.f32.mrf.mxu0
  %v709 = vpop.f32.mrf.mxu0
  %v710 = vadd.f32 0.0, %v709
  %v711 = vpop.f32.mrf.mxu0
  %712 = vmatprep.mubr.bf16.mxu0 0
  %713 = vmatmul.mubr.bf16.gmra.mxu0 %v329
  %v714 = vpop.f32.mrf.mxu0
  %v715 = vadd.f32 0.0, %v714
  %v716 = vpop.f32.mrf.mxu0
  %v717 = vpop.f32.mrf.mxu0
  %v718 = vadd.f32 0.0, %v717
  %v719 = vpop.f32.mrf.mxu0
  %720 = vmatprep.mubr.bf16.mxu0 0
  %721 = vmatmul.mubr.bf16.gmra.mxu0 %v332
  %v722 = vpop.f32.mrf.mxu0
  %v723 = vadd.f32 0.0, %v722
  %v724 = vpop.f32.mrf.mxu0
  %v725 = vpop.f32.mrf.mxu0
  %v726 = vadd.f32 0.0, %v725
  %v727 = vpop.f32.mrf.mxu0
  %728 = vmatprep.mubr.bf16.mxu0 0
  %729 = vmatmul.mubr.bf16.gmra.mxu0 %v335
  %v730 = vpop.f32.mrf.mxu0
  %v731 = vadd.f32 0.0, %v730
  %v732 = vpop.f32.mrf.mxu0
  %v733 = vpop.f32.mrf.mxu0
  %v734 = vadd.f32 0.0, %v733
  %v735 = vpop.f32.mrf.mxu0
  %736 = vmatprep.mubr.bf16.mxu0 0
  %737 = vmatmul.mubr.bf16.gmra.mxu0 %v338
  %v738 = vpop.f32.mrf.mxu0
  %v739 = vadd.f32 0.0, %v738
  %v740 = vpop.f32.mrf.mxu0
  %v741 = vpop.f32.mrf.mxu0
  %v742 = vadd.f32 0.0, %v741
  %v743 = vpop.f32.mrf.mxu0
  %744 = vmatprep.mubr.bf16.mxu0 0
  %745 = vmatmul.mubr.bf16.gmra.mxu0 %v341
  %v746 = vpop.f32.mrf.mxu0
  %v747 = vadd.f32 0.0, %v746
  %v748 = vpop.f32.mrf.mxu0
  %v749 = vpop.f32.mrf.mxu0
  %v750 = vadd.f32 0.0, %v749
  %v751 = vpop.f32.mrf.mxu0
  %752 = vmatprep.mubr.bf16.mxu0 0
  %753 = vmatmul.mubr.bf16.gmra.mxu0 %v344
  %v754 = vpop.f32.mrf.mxu0
  %v755 = vadd.f32 0.0, %v754
  %v756 = vpop.f32.mrf.mxu0
  %v757 = vpop.f32.mrf.mxu0
  %v758 = vadd.f32 0.0, %v757
  %v759 = vpop.f32.mrf.mxu0
  %760 = vmatprep.mubr.bf16.mxu0 0
  %761 = vmatmul.mubr.bf16.gmra.mxu0 %v347
  %v762 = vpop.f32.mrf.mxu0
  %v763 = vadd.f32 0.0, %v762
  %v764 = vpop.f32.mrf.mxu0
  %v765 = vpop.f32.mrf.mxu0
  %v766 = vadd.f32 0.0, %v765
  %v767 = vpop.f32.mrf.mxu0
  %768 = vmatprep.mubr.bf16.mxu0 0
  %769 = vmatmul.mubr.bf16.gmra.mxu0 %v350
  %v770 = vpop.f32.mrf.mxu0
  %v771 = vadd.f32 0.0, %v770
  %v772 = vpop.f32.mrf.mxu0
  %v773 = vpop.f32.mrf.mxu0
  %v774 = vadd.f32 0.0, %v773
  %v775 = vpop.f32.mrf.mxu0
  %776 = vmatprep.mubr.bf16.mxu0 0
  %777 = vmatmul.mubr.bf16.gmra.mxu0 %v353
  %v778 = vpop.f32.mrf.mxu0
  %v779 = vadd.f32 0.0, %v778
  %v780 = vpop.f32.mrf.mxu0
  %v781 = vpop.f32.mrf.mxu0
  %v782 = vadd.f32 0.0, %v781
  %v783 = vpop.f32.mrf.mxu0
  %784 = vmatprep.mubr.bf16.mxu0 0
  %785 = vmatmul.mubr.bf16.gmra.mxu0 %v356
  %v786 = vpop.f32.mrf.mxu0
  %v787 = vadd.f32 0.0, %v786
  %v788 = vpop.f32.mrf.mxu0
  %v789 = vpop.f32.mrf.mxu0
  %v790 = vadd.f32 0.0, %v789
  %v791 = vpop.f32.mrf.mxu0
  %792 = vmatprep.mubr.bf16.mxu0 0
  %793 = vmatmul.mubr.bf16.gmra.mxu0 %v359
  %v794 = vpop.f32.mrf.mxu0
  %v795 = vadd.f32 0.0, %v794
  %v796 = vpop.f32.mrf.mxu0
  %v797 = vpop.f32.mrf.mxu0
  %v798 = vadd.f32 0.0, %v797
  %v799 = vpop.f32.mrf.mxu0
  %800 = vmatprep.mubr.bf16.mxu0 0
  %801 = vmatmul.mubr.bf16.gmra.mxu0 %v362
  %v802 = vpop.f32.mrf.mxu0
  %v803 = vadd.f32 0.0, %v802
  %v804 = vpop.f32.mrf.mxu0
  %v805 = vpop.f32.mrf.mxu0
  %v806 = vadd.f32 0.0, %v805
  %v807 = vpop.f32.mrf.mxu0
  %808 = vmatprep.mubr.bf16.mxu0 0
  %809 = vmatmul.mubr.bf16.gmra.mxu0 %v365
  %v810 = vpop.f32.mrf.mxu0
  %v811 = vadd.f32 0.0, %v810
  %v812 = vpop.f32.mrf.mxu0
  %v813 = vpop.f32.mrf.mxu0
  %v814 = vadd.f32 0.0, %v813
  %v815 = vpop.f32.mrf.mxu0
  %816 = vmatprep.mubr.bf16.mxu0 0
  %817 = vmatmul.mubr.bf16.gmra.mxu0 %v368
  %v818 = vpop.f32.mrf.mxu0
  %v819 = vadd.f32 0.0, %v818
  %v820 = vpop.f32.mrf.mxu0
  %v821 = vpop.f32.mrf.mxu0
  %v822 = vadd.f32 0.0, %v821
  %v823 = vpop.f32.mrf.mxu0
  %824 = vmatprep.mubr.bf16.mxu0 0
  %825 = vmatmul.mubr.bf16.gmra.mxu0 %v371
  %v826 = vpop.f32.mrf.mxu0
  %v827 = vadd.f32 0.0, %v826
  %v828 = vpop.f32.mrf.mxu0
  %v829 = vpop.f32.mrf.mxu0
  %v830 = vadd.f32 0.0, %v829
  %v831 = vpop.f32.mrf.mxu0
  %832 = vmatprep.mubr.bf16.mxu0 0
  %833 = vmatmul.mubr.bf16.gmra.mxu0 %v374
  %v834 = vpop.f32.mrf.mxu0
  %v835 = vadd.f32 0.0, %v834
  %v836 = vpop.f32.mrf.mxu0
  %v837 = vpop.f32.mrf.mxu0
  %v838 = vadd.f32 0.0, %v837
  %v839 = vpop.f32.mrf.mxu0
  %840 = vmatprep.mubr.bf16.mxu0 0
  %841 = vmatmul.mubr.bf16.gmra.mxu0 %v377
  %v842 = vpop.f32.mrf.mxu0
  %v843 = vadd.f32 0.0, %v842
  %v844 = vpop.f32.mrf.mxu0
  %v845 = vpop.f32.mrf.mxu0
  %v846 = vadd.f32 0.0, %v845
  %v847 = vpop.f32.mrf.mxu0
  %848 = vmatprep.mubr.bf16.mxu0 0
  %849 = vmatmul.mubr.bf16.gmra.mxu0 %v380
  %v850 = vpop.f32.mrf.mxu0
  %v851 = vadd.f32 0.0, %v850
  %v852 = vpop.f32.mrf.mxu0
  %v853 = vpop.f32.mrf.mxu0
  %v854 = vadd.f32 0.0, %v853
  %v855 = vpop.f32.mrf.mxu0
  %856 = vmatprep.mubr.bf16.mxu0 0
  %857 = vmatmul.mubr.bf16.gmra.mxu0 %v383
  %v858 = vpop.f32.mrf.mxu0
  %v859 = vadd.f32 0.0, %v858
  %v860 = vpop.f32.mrf.mxu0
  %v861 = vpop.f32.mrf.mxu0
  %v862 = vadd.f32 0.0, %v861
  %v863 = vpop.f32.mrf.mxu0
  %864 = vmatprep.mubr.bf16.mxu0 0
  %865 = vmatmul.mubr.bf16.gmra.mxu0 %v386
  %v866 = vpop.f32.mrf.mxu0
  %v867 = vadd.f32 0.0, %v866
  %v868 = vpop.f32.mrf.mxu0
  %v869 = vpop.f32.mrf.mxu0
  %v870 = vadd.f32 0.0, %v869
  %v871 = vpop.f32.mrf.mxu0
  %872 = vmatprep.mubr.bf16.mxu0 0
  %873 = vmatmul.mubr.bf16.gmra.mxu0 %v389
  %v874 = vpop.f32.mrf.mxu0
  %v875 = vadd.f32 0.0, %v874
  %v876 = vpop.f32.mrf.mxu0
  %v877 = vpop.f32.mrf.mxu0
  %v878 = vadd.f32 0.0, %v877
  %v879 = vpop.f32.mrf.mxu0
  %880 = vmatprep.mubr.bf16.mxu0 0
  %881 = vmatmul.mubr.bf16.gmra.mxu0 %v392
  %v882 = vpop.f32.mrf.mxu0
  %v883 = vadd.f32 0.0, %v882
  %v884 = vpop.f32.mrf.mxu0
  %v885 = vpop.f32.mrf.mxu0
  %v886 = vadd.f32 0.0, %v885
  %v887 = vpop.f32.mrf.mxu0
  %888 = vmatprep.mubr.bf16.mxu0 0
  %889 = vmatmul.mubr.bf16.gmra.mxu0 %v395
  %v890 = vpop.f32.mrf.mxu0
  %v891 = vadd.f32 0.0, %v890
  %v892 = vpop.f32.mrf.mxu0
  %v893 = vpop.f32.mrf.mxu0
  %v894 = vadd.f32 0.0, %v893
  %v895 = vpop.f32.mrf.mxu0
  %896 = vmatprep.mubr.bf16.mxu0 0
  %897 = vmatmul.mubr.bf16.gmra.mxu0 %v398
  %v898 = vpop.f32.mrf.mxu0
  %v899 = vadd.f32 0.0, %v898
  %v900 = vpop.f32.mrf.mxu0
  %v901 = vpop.f32.mrf.mxu0
  %v902 = vadd.f32 0.0, %v901
  %v903 = vpop.f32.mrf.mxu0
  %904 = vmatprep.mubr.bf16.mxu0 0
  %905 = vmatmul.mubr.bf16.gmra.mxu0 %v401
  %v906 = vpop.f32.mrf.mxu0
  %v907 = vadd.f32 0.0, %v906
  %v908 = vpop.f32.mrf.mxu0
  %v909 = vpop.f32.mrf.mxu0
  %v910 = vadd.f32 0.0, %v909
  %v911 = vpop.f32.mrf.mxu0
  %912 = vmatprep.mubr.bf16.mxu0 0
  %913 = vmatmul.mubr.bf16.gmra.mxu0 %v404
  %v914 = vpop.f32.mrf.mxu0
  %v915 = vadd.f32 0.0, %v914
  %v916 = vpop.f32.mrf.mxu0
  %v917 = vpop.f32.mrf.mxu0
  %v918 = vadd.f32 0.0, %v917
  %v919 = vpop.f32.mrf.mxu0
  %920 = vmatprep.mubr.bf16.mxu0 0
  %921 = vmatmul.mubr.bf16.gmra.mxu0 %v407
  %v922 = vpop.f32.mrf.mxu0
  %v923 = vadd.f32 0.0, %v922
  %v924 = vpop.f32.mrf.mxu0
  %v925 = vpop.f32.mrf.mxu0
  %v926 = vadd.f32 0.0, %v925
  %v927 = vpop.f32.mrf.mxu0
  %928 = vmatprep.mubr.bf16.mxu0 0
  %929 = vmatmul.mubr.bf16.gmra.mxu0 %v410
  %v930 = vpop.f32.mrf.mxu0
  %v931 = vadd.f32 0.0, %v930
  %v932 = vpop.f32.mrf.mxu0
  %v933 = vpop.f32.mrf.mxu0
  %v934 = vadd.f32 0.0, %v933
  %v935 = vpop.f32.mrf.mxu0
  %936 = vmatprep.mubr.bf16.mxu0 0
  %937 = vmatmul.mubr.bf16.gmra.mxu0 %v413
  %v938 = vpop.f32.mrf.mxu0
  %v939 = vadd.f32 0.0, %v938
  %v940 = vpop.f32.mrf.mxu0
  %v941 = vpop.f32.mrf.mxu0
  %v942 = vadd.f32 0.0, %v941
  %v943 = vpop.f32.mrf.mxu0
  %944 = vmatprep.mubr.bf16.mxu0 0
  %945 = vmatmul.mubr.bf16.gmra.mxu0 %v416
  %v946 = vpop.f32.mrf.mxu0
  %v947 = vadd.f32 0.0, %v946
  %v948 = vpop.f32.mrf.mxu0
  %v949 = vpop.f32.mrf.mxu0
  %v950 = vadd.f32 0.0, %v949
  %v951 = vpop.f32.mrf.mxu0
  %952 = vmatprep.mubr.bf16.mxu0 0
  %953 = vmatmul.mubr.bf16.gmra.mxu0 %v419
  %v954 = vpop.f32.mrf.mxu0
  %v955 = vadd.f32 0.0, %v954
  %v956 = vpop.f32.mrf.mxu0
  %v957 = vpop.f32.mrf.mxu0
  %v958 = vadd.f32 0.0, %v957
  %v959 = vpop.f32.mrf.mxu0
  %960 = vmatprep.mubr.bf16.mxu0 0
  %961 = vmatmul.mubr.bf16.gmra.mxu0 %v422
  %v962 = vpop.f32.mrf.mxu0
  %v963 = vadd.f32 0.0, %v962
  %v964 = vpop.f32.mrf.mxu0
  %v965 = vpop.f32.mrf.mxu0
  %v966 = vadd.f32 0.0, %v965
  %v967 = vpop.f32.mrf.mxu0
  %968 = vdwg.mxu0
  %v969 = vmax.f32 %v459, %v587
  %v970 = vmax.f32 %v462, %v590
  %v971 = vmax.f32 %v467, %v595
  %v972 = vmax.f32 %v470, %v598
  %v973 = vmax.f32 %v475, %v603
  %v974 = vmax.f32 %v478, %v606
  %v975 = vmax.f32 %v483, %v611
  %v976 = vmax.f32 %v486, %v614
  %v977 = vmax.f32 %v491, %v619
  %v978 = vmax.f32 %v494, %v622
  %v979 = vmax.f32 %v499, %v627
  %v980 = vmax.f32 %v502, %v630
  %v981 = vmax.f32 %v507, %v635
  %v982 = vmax.f32 %v510, %v638
  %v983 = vmax.f32 %v515, %v643
  %v984 = vmax.f32 %v518, %v646
  %v985 = vmax.f32 %v523, %v651
  %v986 = vmax.f32 %v526, %v654
  %v987 = vmax.f32 %v531, %v659
  %v988 = vmax.f32 %v534, %v662
  %v989 = vmax.f32 %v539, %v667
  %v990 = vmax.f32 %v542, %v670
  %v991 = vmax.f32 %v547, %v675
  %v992 = vmax.f32 %v550, %v678
  %v993 = vmax.f32 %v555, %v683
  %v994 = vmax.f32 %v558, %v686
  %v995 = vmax.f32 %v563, %v691
  %v996 = vmax.f32 %v566, %v694
  %v997 = vmax.f32 %v571, %v699
  %v998 = vmax.f32 %v574, %v702
  %v999 = vmax.f32 %v579, %v707
  %v1000 = vmax.f32 %v582, %v710
  %v1001 = vmax.f32 %v715, %v843
  %v1002 = vmax.f32 %v718, %v846
  %v1003 = vmax.f32 %v723, %v851
  %v1004 = vmax.f32 %v726, %v854
  %v1005 = vmax.f32 %v731, %v859
  %v1006 = vmax.f32 %v734, %v862
  %v1007 = vmax.f32 %v739, %v867
  %v1008 = vmax.f32 %v742, %v870
  %v1009 = vmax.f32 %v747, %v875
  %v1010 = vmax.f32 %v750, %v878
  %v1011 = vmax.f32 %v755, %v883
  %v1012 = vmax.f32 %v758, %v886
  %v1013 = vmax.f32 %v763, %v891
  %v1014 = vmax.f32 %v766, %v894
  %v1015 = vmax.f32 %v771, %v899
  %v1016 = vmax.f32 %v774, %v902
  %v1017 = vmax.f32 %v779, %v907
  %v1018 = vmax.f32 %v782, %v910
  %v1019 = vmax.f32 %v787, %v915
  %v1020 = vmax.f32 %v790, %v918
  %v1021 = vmax.f32 %v795, %v923
  %v1022 = vmax.f32 %v798, %v926
  %v1023 = vmax.f32 %v803, %v931
  %v1024 = vmax.f32 %v806, %v934
  %v1025 = vmax.f32 %v811, %v939
  %v1026 = vmax.f32 %v814, %v942
  %v1027 = vmax.f32 %v819, %v947
  %v1028 = vmax.f32 %v822, %v950
  %v1029 = vmax.f32 %v827, %v955
  %v1030 = vmax.f32 %v830, %v958
  %v1031 = vmax.f32 %v835, %v963
  %v1032 = vmax.f32 %v838, %v966
  %v1033 = vmax.f32 %v969, %v1001
  %v1034 = vmax.f32 %v970, %v1002
  %v1035 = vmax.f32 %v971, %v1003
  %v1036 = vmax.f32 %v972, %v1004
  %v1037 = vmax.f32 %v973, %v1005
  %v1038 = vmax.f32 %v974, %v1006
  %v1039 = vmax.f32 %v975, %v1007
  %v1040 = vmax.f32 %v976, %v1008
  %v1041 = vmax.f32 %v977, %v1009
  %v1042 = vmax.f32 %v978, %v1010
  %v1043 = vmax.f32 %v979, %v1011
  %v1044 = vmax.f32 %v980, %v1012
  %v1045 = vmax.f32 %v981, %v1013
  %v1046 = vmax.f32 %v982, %v1014
  %v1047 = vmax.f32 %v983, %v1015
  %v1048 = vmax.f32 %v984, %v1016
  %v1049 = vmax.f32 %v985, %v1017
  %v1050 = vmax.f32 %v986, %v1018
  %v1051 = vmax.f32 %v987, %v1019
  %v1052 = vmax.f32 %v988, %v1020
  %v1053 = vmax.f32 %v989, %v1021
  %v1054 = vmax.f32 %v990, %v1022
  %v1055 = vmax.f32 %v991, %v1023
  %v1056 = vmax.f32 %v992, %v1024
  %v1057 = vmax.f32 %v993, %v1025
  %v1058 = vmax.f32 %v994, %v1026
  %v1059 = vmax.f32 %v995, %v1027
  %v1060 = vmax.f32 %v996, %v1028
  %v1061 = vmax.f32 %v997, %v1029
  %v1062 = vmax.f32 %v998, %v1030
  %v1063 = vmax.f32 %v999, %v1031
  %v1064 = vmax.f32 %v1000, %v1032
  %v1065 = vld [vmem:[%s2] sm:$0x1]
  %v1067 = vlaneseq
  %v1068 = vshrl.u32 %v1067, 7
  %v1069 = vsub.s32 0, %v1068
  %v1070 = vrot.slane %v1065, %v1069
  %v1072 = vadd.f32 %v1033, %v1070
  %v1073 = vadd.f32 %v1034, %v1070
  %v1074 = vadd.f32 %v1035, %v1070
  %v1075 = vadd.f32 %v1036, %v1070
  %v1076 = vadd.f32 %v1037, %v1070
  %v1077 = vadd.f32 %v1038, %v1070
  %v1078 = vadd.f32 %v1039, %v1070
  %v1079 = vadd.f32 %v1040, %v1070
  %v1080 = vadd.f32 %v1041, %v1070
  %v1081 = vadd.f32 %v1042, %v1070
  %v1082 = vadd.f32 %v1043, %v1070
  %v1083 = vadd.f32 %v1044, %v1070
  %v1084 = vadd.f32 %v1045, %v1070
  %v1085 = vadd.f32 %v1046, %v1070
  %v1086 = vadd.f32 %v1047, %v1070
  %v1087 = vadd.f32 %v1048, %v1070
  %v1088 = vadd.f32 %v1049, %v1070
  %v1089 = vadd.f32 %v1050, %v1070
  %v1090 = vadd.f32 %v1051, %v1070
  %v1091 = vadd.f32 %v1052, %v1070
  %v1092 = vadd.f32 %v1053, %v1070
  %v1093 = vadd.f32 %v1054, %v1070
  %v1094 = vadd.f32 %v1055, %v1070
  %v1095 = vadd.f32 %v1056, %v1070
  %v1096 = vadd.f32 %v1057, %v1070
  %v1097 = vadd.f32 %v1058, %v1070
  %v1098 = vadd.f32 %v1059, %v1070
  %v1099 = vadd.f32 %v1060, %v1070
  %v1100 = vadd.f32 %v1061, %v1070
  %v1101 = vadd.f32 %v1062, %v1070
  %v1102 = vadd.f32 %v1063, %v1070
  %v1103 = vadd.f32 %v1064, %v1070
  %v1104 = vmax.f32 %v1072, 0.0
  %v1105 = vmax.f32 %v1073, 0.0
  %v1106 = vmax.f32 %v1074, 0.0
  %v1107 = vmax.f32 %v1075, 0.0
  %v1108 = vmax.f32 %v1076, 0.0
  %v1109 = vmax.f32 %v1077, 0.0
  %v1110 = vmax.f32 %v1078, 0.0
  %v1111 = vmax.f32 %v1079, 0.0
  %v1112 = vmax.f32 %v1080, 0.0
  %v1113 = vmax.f32 %v1081, 0.0
  %v1114 = vmax.f32 %v1082, 0.0
  %v1115 = vmax.f32 %v1083, 0.0
  %v1116 = vmax.f32 %v1084, 0.0
  %v1117 = vmax.f32 %v1085, 0.0
  %v1118 = vmax.f32 %v1086, 0.0
  %v1119 = vmax.f32 %v1087, 0.0
  %v1120 = vmax.f32 %v1088, 0.0
  %v1121 = vmax.f32 %v1089, 0.0
  %v1122 = vmax.f32 %v1090, 0.0
  %v1123 = vmax.f32 %v1091, 0.0
  %v1124 = vmax.f32 %v1092, 0.0
  %v1125 = vmax.f32 %v1093, 0.0
  %v1126 = vmax.f32 %v1094, 0.0
  %v1127 = vmax.f32 %v1095, 0.0
  %v1128 = vmax.f32 %v1096, 0.0
  %v1129 = vmax.f32 %v1097, 0.0
  %v1130 = vmax.f32 %v1098, 0.0
  %v1131 = vmax.f32 %v1099, 0.0
  %v1132 = vmax.f32 %v1100, 0.0
  %v1133 = vmax.f32 %v1101, 0.0
  %v1134 = vmax.f32 %v1102, 0.0
  %v1135 = vmax.f32 %v1103, 0.0
  %v1136 = vpack.c.bf16 %v1105, %v1104
  %v1137 = vpack.c.bf16 %v1107, %v1106
  %v1138 = vpack.c.bf16 %v1109, %v1108
  %v1139 = vpack.c.bf16 %v1111, %v1110
  %v1140 = vpack.c.bf16 %v1113, %v1112
  %v1141 = vpack.c.bf16 %v1115, %v1114
  %v1142 = vpack.c.bf16 %v1117, %v1116
  %v1143 = vpack.c.bf16 %v1119, %v1118
  %v1144 = vpack.c.bf16 %v1121, %v1120
  %v1145 = vpack.c.bf16 %v1123, %v1122
  %v1146 = vpack.c.bf16 %v1125, %v1124
  %v1147 = vpack.c.bf16 %v1127, %v1126
  %v1148 = vpack.c.bf16 %v1129, %v1128
  %v1149 = vpack.c.bf16 %v1131, %v1130
  %v1150 = vpack.c.bf16 %v1133, %v1132
  %v1151 = vpack.c.bf16 %v1135, %v1134
  %v1152 = vld [vmem:[%s3] sm:$0xff]
  %v1153 = vld [vmem:[%s3 + $0x8] sm:$0xff]
  %v1154 = vld [vmem:[%s3 + $0x10] sm:$0xff]
  %v1155 = vld [vmem:[%s3 + $0x18] sm:$0xff]
  %v1156 = vld [vmem:[%s3 + $0x20] sm:$0xff]
  %v1157 = vld [vmem:[%s3 + $0x28] sm:$0xff]
  %v1158 = vld [vmem:[%s3 + $0x30] sm:$0xff]
  %v1159 = vld [vmem:[%s3 + $0x38] sm:$0xff]
  %v1160 = vld [vmem:[%s3 + $0x40] sm:$0xff]
  %v1161 = vld [vmem:[%s3 + $0x48] sm:$0xff]
  %v1162 = vld [vmem:[%s3 + $0x50] sm:$0xff]
  %v1163 = vld [vmem:[%s3 + $0x58] sm:$0xff]
  %v1164 = vld [vmem:[%s3 + $0x60] sm:$0xff]
  %v1165 = vld [vmem:[%s3 + $0x68] sm:$0xff]
  %v1166 = vld [vmem:[%s3 + $0x70] sm:$0xff]
  %v1167 = vld [vmem:[%s3 + $0x78] sm:$0xff]
  %v1168 = vld [vmem:[%s3 + $0x80] sm:$0xff]
  %v1169 = vld [vmem:[%s3 + $0x88] sm:$0xff]
  %v1170 = vld [vmem:[%s3 + $0x90] sm:$0xff]
  %v1171 = vld [vmem:[%s3 + $0x98] sm:$0xff]
  %v1172 = vld [vmem:[%s3 + $0xa0] sm:$0xff]
  %v1173 = vld [vmem:[%s3 + $0xa8] sm:$0xff]
  %v1174 = vld [vmem:[%s3 + $0xb0] sm:$0xff]
  %v1175 = vld [vmem:[%s3 + $0xb8] sm:$0xff]
  %v1176 = vld [vmem:[%s3 + $0xc0] sm:$0xff]
  %v1177 = vld [vmem:[%s3 + $0xc8] sm:$0xff]
  %v1178 = vld [vmem:[%s3 + $0xd0] sm:$0xff]
  %v1179 = vld [vmem:[%s3 + $0xd8] sm:$0xff]
  %v1180 = vld [vmem:[%s3 + $0xe0] sm:$0xff]
  %v1181 = vld [vmem:[%s3 + $0xe8] sm:$0xff]
  %v1182 = vld [vmem:[%s3 + $0xf0] sm:$0xff]
  %v1183 = vld [vmem:[%s3 + $0xf8] sm:$0xff]
  %v1184 = vld [vmem:[%s3 + $0x100] sm:$0xff]
  %v1185 = vld [vmem:[%s3 + $0x108] sm:$0xff]
  %v1186 = vld [vmem:[%s3 + $0x110] sm:$0xff]
  %v1187 = vld [vmem:[%s3 + $0x118] sm:$0xff]
  %v1188 = vld [vmem:[%s3 + $0x120] sm:$0xff]
  %v1189 = vld [vmem:[%s3 + $0x128] sm:$0xff]
  %v1190 = vld [vmem:[%s3 + $0x130] sm:$0xff]
  %v1191 = vld [vmem:[%s3 + $0x138] sm:$0xff]
  %v1192 = vld [vmem:[%s3 + $0x140] sm:$0xff]
  %v1193 = vld [vmem:[%s3 + $0x148] sm:$0xff]
  %v1194 = vld [vmem:[%s3 + $0x150] sm:$0xff]
  %v1195 = vld [vmem:[%s3 + $0x158] sm:$0xff]
  %v1196 = vld [vmem:[%s3 + $0x160] sm:$0xff]
  %v1197 = vld [vmem:[%s3 + $0x168] sm:$0xff]
  %v1198 = vld [vmem:[%s3 + $0x170] sm:$0xff]
  %v1199 = vld [vmem:[%s3 + $0x178] sm:$0xff]
  %v1200 = vld [vmem:[%s3 + $0x180] sm:$0xff]
  %v1201 = vld [vmem:[%s3 + $0x188] sm:$0xff]
  %v1202 = vld [vmem:[%s3 + $0x190] sm:$0xff]
  %v1203 = vld [vmem:[%s3 + $0x198] sm:$0xff]
  %v1204 = vld [vmem:[%s3 + $0x1a0] sm:$0xff]
  %v1205 = vld [vmem:[%s3 + $0x1a8] sm:$0xff]
  %v1206 = vld [vmem:[%s3 + $0x1b0] sm:$0xff]
  %v1207 = vld [vmem:[%s3 + $0x1b8] sm:$0xff]
  %v1208 = vld [vmem:[%s3 + $0x1c0] sm:$0xff]
  %v1209 = vld [vmem:[%s3 + $0x1c8] sm:$0xff]
  %v1210 = vld [vmem:[%s3 + $0x1d0] sm:$0xff]
  %v1211 = vld [vmem:[%s3 + $0x1d8] sm:$0xff]
  %v1212 = vld [vmem:[%s3 + $0x1e0] sm:$0xff]
  %v1213 = vld [vmem:[%s3 + $0x1e8] sm:$0xff]
  %v1214 = vld [vmem:[%s3 + $0x1f0] sm:$0xff]
  %v1215 = vld [vmem:[%s3 + $0x1f8] sm:$0xff]
  %v1216 = vld [vmem:[%s3 + $0x200] sm:$0xff]
  %v1217 = vld [vmem:[%s3 + $0x208] sm:$0xff]
  %v1218 = vld [vmem:[%s3 + $0x210] sm:$0xff]
  %v1219 = vld [vmem:[%s3 + $0x218] sm:$0xff]
  %v1220 = vld [vmem:[%s3 + $0x220] sm:$0xff]
  %v1221 = vld [vmem:[%s3 + $0x228] sm:$0xff]
  %v1222 = vld [vmem:[%s3 + $0x230] sm:$0xff]
  %v1223 = vld [vmem:[%s3 + $0x238] sm:$0xff]
  %v1224 = vld [vmem:[%s3 + $0x240] sm:$0xff]
  %v1225 = vld [vmem:[%s3 + $0x248] sm:$0xff]
  %v1226 = vld [vmem:[%s3 + $0x250] sm:$0xff]
  %v1227 = vld [vmem:[%s3 + $0x258] sm:$0xff]
  %v1228 = vld [vmem:[%s3 + $0x260] sm:$0xff]
  %v1229 = vld [vmem:[%s3 + $0x268] sm:$0xff]
  %v1230 = vld [vmem:[%s3 + $0x270] sm:$0xff]
  %v1231 = vld [vmem:[%s3 + $0x278] sm:$0xff]
  %v1232 = vld [vmem:[%s3 + $0x280] sm:$0xff]
  %v1233 = vld [vmem:[%s3 + $0x288] sm:$0xff]
  %v1234 = vld [vmem:[%s3 + $0x290] sm:$0xff]
  %v1235 = vld [vmem:[%s3 + $0x298] sm:$0xff]
  %v1236 = vld [vmem:[%s3 + $0x2a0] sm:$0xff]
  %v1237 = vld [vmem:[%s3 + $0x2a8] sm:$0xff]
  %v1238 = vld [vmem:[%s3 + $0x2b0] sm:$0xff]
  %v1239 = vld [vmem:[%s3 + $0x2b8] sm:$0xff]
  %v1240 = vld [vmem:[%s3 + $0x2c0] sm:$0xff]
  %v1241 = vld [vmem:[%s3 + $0x2c8] sm:$0xff]
  %v1242 = vld [vmem:[%s3 + $0x2d0] sm:$0xff]
  %v1243 = vld [vmem:[%s3 + $0x2d8] sm:$0xff]
  %v1244 = vld [vmem:[%s3 + $0x2e0] sm:$0xff]
  %v1245 = vld [vmem:[%s3 + $0x2e8] sm:$0xff]
  %v1246 = vld [vmem:[%s3 + $0x2f0] sm:$0xff]
  %v1247 = vld [vmem:[%s3 + $0x2f8] sm:$0xff]
  %v1248 = vld [vmem:[%s3 + $0x300] sm:$0xff]
  %v1249 = vld [vmem:[%s3 + $0x308] sm:$0xff]
  %v1250 = vld [vmem:[%s3 + $0x310] sm:$0xff]
  %v1251 = vld [vmem:[%s3 + $0x318] sm:$0xff]
  %v1252 = vld [vmem:[%s3 + $0x320] sm:$0xff]
  %v1253 = vld [vmem:[%s3 + $0x328] sm:$0xff]
  %v1254 = vld [vmem:[%s3 + $0x330] sm:$0xff]
  %v1255 = vld [vmem:[%s3 + $0x338] sm:$0xff]
  %v1256 = vld [vmem:[%s3 + $0x340] sm:$0xff]
  %v1257 = vld [vmem:[%s3 + $0x348] sm:$0xff]
  %v1258 = vld [vmem:[%s3 + $0x350] sm:$0xff]
  %v1259 = vld [vmem:[%s3 + $0x358] sm:$0xff]
  %v1260 = vld [vmem:[%s3 + $0x360] sm:$0xff]
  %v1261 = vld [vmem:[%s3 + $0x368] sm:$0xff]
  %v1262 = vld [vmem:[%s3 + $0x370] sm:$0xff]
  %v1263 = vld [vmem:[%s3 + $0x378] sm:$0xff]
  %v1264 = vld [vmem:[%s3 + $0x380] sm:$0xff]
  %v1265 = vld [vmem:[%s3 + $0x388] sm:$0xff]
  %v1266 = vld [vmem:[%s3 + $0x390] sm:$0xff]
  %v1267 = vld [vmem:[%s3 + $0x398] sm:$0xff]
  %v1268 = vld [vmem:[%s3 + $0x3a0] sm:$0xff]
  %v1269 = vld [vmem:[%s3 + $0x3a8] sm:$0xff]
  %v1270 = vld [vmem:[%s3 + $0x3b0] sm:$0xff]
  %v1271 = vld [vmem:[%s3 + $0x3b8] sm:$0xff]
  %v1272 = vld [vmem:[%s3 + $0x3c0] sm:$0xff]
  %v1273 = vld [vmem:[%s3 + $0x3c8] sm:$0xff]
  %v1274 = vld [vmem:[%s3 + $0x3d0] sm:$0xff]
  %v1275 = vld [vmem:[%s3 + $0x3d8] sm:$0xff]
  %v1276 = vld [vmem:[%s3 + $0x3e0] sm:$0xff]
  %v1277 = vld [vmem:[%s3 + $0x3e8] sm:$0xff]
  %v1278 = vld [vmem:[%s3 + $0x3f0] sm:$0xff]
  %v1279 = vld [vmem:[%s3 + $0x3f8] sm:$0xff]
  %v1280 = vld [vmem:[%s3 + $0x400] sm:$0xff]
  %v1281 = vld [vmem:[%s3 + $0x408] sm:$0xff]
  %v1282 = vld [vmem:[%s3 + $0x410] sm:$0xff]
  %v1283 = vld [vmem:[%s3 + $0x418] sm:$0xff]
  %v1284 = vld [vmem:[%s3 + $0x420] sm:$0xff]
  %v1285 = vld [vmem:[%s3 + $0x428] sm:$0xff]
  %v1286 = vld [vmem:[%s3 + $0x430] sm:$0xff]
  %v1287 = vld [vmem:[%s3 + $0x438] sm:$0xff]
  %v1288 = vld [vmem:[%s3 + $0x440] sm:$0xff]
  %v1289 = vld [vmem:[%s3 + $0x448] sm:$0xff]
  %v1290 = vld [vmem:[%s3 + $0x450] sm:$0xff]
  %v1291 = vld [vmem:[%s3 + $0x458] sm:$0xff]
  %v1292 = vld [vmem:[%s3 + $0x460] sm:$0xff]
  %v1293 = vld [vmem:[%s3 + $0x468] sm:$0xff]
  %v1294 = vld [vmem:[%s3 + $0x470] sm:$0xff]
  %v1295 = vld [vmem:[%s3 + $0x478] sm:$0xff]
  %v1296 = vld [vmem:[%s3 + $0x480] sm:$0xff]
  %v1297 = vld [vmem:[%s3 + $0x488] sm:$0xff]
  %v1298 = vld [vmem:[%s3 + $0x490] sm:$0xff]
  %v1299 = vld [vmem:[%s3 + $0x498] sm:$0xff]
  %v1300 = vld [vmem:[%s3 + $0x4a0] sm:$0xff]
  %v1301 = vld [vmem:[%s3 + $0x4a8] sm:$0xff]
  %v1302 = vld [vmem:[%s3 + $0x4b0] sm:$0xff]
  %v1303 = vld [vmem:[%s3 + $0x4b8] sm:$0xff]
  %v1304 = vld [vmem:[%s3 + $0x4c0] sm:$0xff]
  %v1305 = vld [vmem:[%s3 + $0x4c8] sm:$0xff]
  %v1306 = vld [vmem:[%s3 + $0x4d0] sm:$0xff]
  %v1307 = vld [vmem:[%s3 + $0x4d8] sm:$0xff]
  %v1308 = vld [vmem:[%s3 + $0x4e0] sm:$0xff]
  %v1309 = vld [vmem:[%s3 + $0x4e8] sm:$0xff]
  %v1310 = vld [vmem:[%s3 + $0x4f0] sm:$0xff]
  %v1311 = vld [vmem:[%s3 + $0x4f8] sm:$0xff]
  %v1312 = vld [vmem:[%s3 + $0x500] sm:$0xff]
  %v1313 = vld [vmem:[%s3 + $0x508] sm:$0xff]
  %v1314 = vld [vmem:[%s3 + $0x510] sm:$0xff]
  %v1315 = vld [vmem:[%s3 + $0x518] sm:$0xff]
  %v1316 = vld [vmem:[%s3 + $0x520] sm:$0xff]
  %v1317 = vld [vmem:[%s3 + $0x528] sm:$0xff]
  %v1318 = vld [vmem:[%s3 + $0x530] sm:$0xff]
  %v1319 = vld [vmem:[%s3 + $0x538] sm:$0xff]
  %v1320 = vld [vmem:[%s3 + $0x540] sm:$0xff]
  %v1321 = vld [vmem:[%s3 + $0x548] sm:$0xff]
  %v1322 = vld [vmem:[%s3 + $0x550] sm:$0xff]
  %v1323 = vld [vmem:[%s3 + $0x558] sm:$0xff]
  %v1324 = vld [vmem:[%s3 + $0x560] sm:$0xff]
  %v1325 = vld [vmem:[%s3 + $0x568] sm:$0xff]
  %v1326 = vld [vmem:[%s3 + $0x570] sm:$0xff]
  %v1327 = vld [vmem:[%s3 + $0x578] sm:$0xff]
  %v1328 = vld [vmem:[%s3 + $0x580] sm:$0xff]
  %v1329 = vld [vmem:[%s3 + $0x588] sm:$0xff]
  %v1330 = vld [vmem:[%s3 + $0x590] sm:$0xff]
  %v1331 = vld [vmem:[%s3 + $0x598] sm:$0xff]
  %v1332 = vld [vmem:[%s3 + $0x5a0] sm:$0xff]
  %v1333 = vld [vmem:[%s3 + $0x5a8] sm:$0xff]
  %v1334 = vld [vmem:[%s3 + $0x5b0] sm:$0xff]
  %v1335 = vld [vmem:[%s3 + $0x5b8] sm:$0xff]
  %v1336 = vld [vmem:[%s3 + $0x5c0] sm:$0xff]
  %v1337 = vld [vmem:[%s3 + $0x5c8] sm:$0xff]
  %v1338 = vld [vmem:[%s3 + $0x5d0] sm:$0xff]
  %v1339 = vld [vmem:[%s3 + $0x5d8] sm:$0xff]
  %v1340 = vld [vmem:[%s3 + $0x5e0] sm:$0xff]
  %v1341 = vld [vmem:[%s3 + $0x5e8] sm:$0xff]
  %v1342 = vld [vmem:[%s3 + $0x5f0] sm:$0xff]
  %v1343 = vld [vmem:[%s3 + $0x5f8] sm:$0xff]
  %v1344 = vld [vmem:[%s3 + $0x600] sm:$0xff]
  %v1345 = vld [vmem:[%s3 + $0x608] sm:$0xff]
  %v1346 = vld [vmem:[%s3 + $0x610] sm:$0xff]
  %v1347 = vld [vmem:[%s3 + $0x618] sm:$0xff]
  %v1348 = vld [vmem:[%s3 + $0x620] sm:$0xff]
  %v1349 = vld [vmem:[%s3 + $0x628] sm:$0xff]
  %v1350 = vld [vmem:[%s3 + $0x630] sm:$0xff]
  %v1351 = vld [vmem:[%s3 + $0x638] sm:$0xff]
  %v1352 = vld [vmem:[%s3 + $0x640] sm:$0xff]
  %v1353 = vld [vmem:[%s3 + $0x648] sm:$0xff]
  %v1354 = vld [vmem:[%s3 + $0x650] sm:$0xff]
  %v1355 = vld [vmem:[%s3 + $0x658] sm:$0xff]
  %v1356 = vld [vmem:[%s3 + $0x660] sm:$0xff]
  %v1357 = vld [vmem:[%s3 + $0x668] sm:$0xff]
  %v1358 = vld [vmem:[%s3 + $0x670] sm:$0xff]
  %v1359 = vld [vmem:[%s3 + $0x678] sm:$0xff]
  %v1360 = vld [vmem:[%s3 + $0x680] sm:$0xff]
  %v1361 = vld [vmem:[%s3 + $0x688] sm:$0xff]
  %v1362 = vld [vmem:[%s3 + $0x690] sm:$0xff]
  %v1363 = vld [vmem:[%s3 + $0x698] sm:$0xff]
  %v1364 = vld [vmem:[%s3 + $0x6a0] sm:$0xff]
  %v1365 = vld [vmem:[%s3 + $0x6a8] sm:$0xff]
  %v1366 = vld [vmem:[%s3 + $0x6b0] sm:$0xff]
  %v1367 = vld [vmem:[%s3 + $0x6b8] sm:$0xff]
  %v1368 = vld [vmem:[%s3 + $0x6c0] sm:$0xff]
  %v1369 = vld [vmem:[%s3 + $0x6c8] sm:$0xff]
  %v1370 = vld [vmem:[%s3 + $0x6d0] sm:$0xff]
  %v1371 = vld [vmem:[%s3 + $0x6d8] sm:$0xff]
  %v1372 = vld [vmem:[%s3 + $0x6e0] sm:$0xff]
  %v1373 = vld [vmem:[%s3 + $0x6e8] sm:$0xff]
  %v1374 = vld [vmem:[%s3 + $0x6f0] sm:$0xff]
  %v1375 = vld [vmem:[%s3 + $0x6f8] sm:$0xff]
  %v1376 = vld [vmem:[%s3 + $0x700] sm:$0xff]
  %v1377 = vld [vmem:[%s3 + $0x708] sm:$0xff]
  %v1378 = vld [vmem:[%s3 + $0x710] sm:$0xff]
  %v1379 = vld [vmem:[%s3 + $0x718] sm:$0xff]
  %v1380 = vld [vmem:[%s3 + $0x720] sm:$0xff]
  %v1381 = vld [vmem:[%s3 + $0x728] sm:$0xff]
  %v1382 = vld [vmem:[%s3 + $0x730] sm:$0xff]
  %v1383 = vld [vmem:[%s3 + $0x738] sm:$0xff]
  %v1384 = vld [vmem:[%s3 + $0x740] sm:$0xff]
  %v1385 = vld [vmem:[%s3 + $0x748] sm:$0xff]
  %v1386 = vld [vmem:[%s3 + $0x750] sm:$0xff]
  %v1387 = vld [vmem:[%s3 + $0x758] sm:$0xff]
  %v1388 = vld [vmem:[%s3 + $0x760] sm:$0xff]
  %v1389 = vld [vmem:[%s3 + $0x768] sm:$0xff]
  %v1390 = vld [vmem:[%s3 + $0x770] sm:$0xff]
  %v1391 = vld [vmem:[%s3 + $0x778] sm:$0xff]
  %v1392 = vld [vmem:[%s3 + $0x780] sm:$0xff]
  %v1393 = vld [vmem:[%s3 + $0x788] sm:$0xff]
  %v1394 = vld [vmem:[%s3 + $0x790] sm:$0xff]
  %v1395 = vld [vmem:[%s3 + $0x798] sm:$0xff]
  %v1396 = vld [vmem:[%s3 + $0x7a0] sm:$0xff]
  %v1397 = vld [vmem:[%s3 + $0x7a8] sm:$0xff]
  %v1398 = vld [vmem:[%s3 + $0x7b0] sm:$0xff]
  %v1399 = vld [vmem:[%s3 + $0x7b8] sm:$0xff]
  %v1400 = vld [vmem:[%s3 + $0x7c0] sm:$0xff]
  %v1401 = vld [vmem:[%s3 + $0x7c8] sm:$0xff]
  %v1402 = vld [vmem:[%s3 + $0x7d0] sm:$0xff]
  %v1403 = vld [vmem:[%s3 + $0x7d8] sm:$0xff]
  %v1404 = vld [vmem:[%s3 + $0x7e0] sm:$0xff]
  %v1405 = vld [vmem:[%s3 + $0x7e8] sm:$0xff]
  %v1406 = vld [vmem:[%s3 + $0x7f0] sm:$0xff]
  %v1407 = vld [vmem:[%s3 + $0x7f8] sm:$0xff]
  %v1408 = vpack.c.bf16 %v1156, %v1152
  %v1409 = vpack.c.bf16 %v1157, %v1153
  %v1410 = vpack.c.bf16 %v1158, %v1154
  %v1411 = vpack.c.bf16 %v1159, %v1155
  %v1412 = vpack.c.bf16 %v1164, %v1160
  %v1413 = vpack.c.bf16 %v1165, %v1161
  %v1414 = vpack.c.bf16 %v1166, %v1162
  %v1415 = vpack.c.bf16 %v1167, %v1163
  %v1416 = vpack.c.bf16 %v1172, %v1168
  %v1417 = vpack.c.bf16 %v1173, %v1169
  %v1418 = vpack.c.bf16 %v1174, %v1170
  %v1419 = vpack.c.bf16 %v1175, %v1171
  %v1420 = vpack.c.bf16 %v1180, %v1176
  %v1421 = vpack.c.bf16 %v1181, %v1177
  %v1422 = vpack.c.bf16 %v1182, %v1178
  %v1423 = vpack.c.bf16 %v1183, %v1179
  %v1424 = vpack.c.bf16 %v1188, %v1184
  %v1425 = vpack.c.bf16 %v1189, %v1185
  %v1426 = vpack.c.bf16 %v1190, %v1186
  %v1427 = vpack.c.bf16 %v1191, %v1187
  %v1428 = vpack.c.bf16 %v1196, %v1192
  %v1429 = vpack.c.bf16 %v1197, %v1193
  %v1430 = vpack.c.bf16 %v1198, %v1194
  %v1431 = vpack.c.bf16 %v1199, %v1195
  %v1432 = vpack.c.bf16 %v1204, %v1200
  %v1433 = vpack.c.bf16 %v1205, %v1201
  %v1434 = vpack.c.bf16 %v1206, %v1202
  %v1435 = vpack.c.bf16 %v1207, %v1203
  %v1436 = vpack.c.bf16 %v1212, %v1208
  %v1437 = vpack.c.bf16 %v1213, %v1209
  %v1438 = vpack.c.bf16 %v1214, %v1210
  %v1439 = vpack.c.bf16 %v1215, %v1211
  %v1440 = vpack.c.bf16 %v1220, %v1216
  %v1441 = vpack.c.bf16 %v1221, %v1217
  %v1442 = vpack.c.bf16 %v1222, %v1218
  %v1443 = vpack.c.bf16 %v1223, %v1219
  %v1444 = vpack.c.bf16 %v1228, %v1224
  %v1445 = vpack.c.bf16 %v1229, %v1225
  %v1446 = vpack.c.bf16 %v1230, %v1226
  %v1447 = vpack.c.bf16 %v1231, %v1227
  %v1448 = vpack.c.bf16 %v1236, %v1232
  %v1449 = vpack.c.bf16 %v1237, %v1233
  %v1450 = vpack.c.bf16 %v1238, %v1234
  %v1451 = vpack.c.bf16 %v1239, %v1235
  %v1452 = vpack.c.bf16 %v1244, %v1240
  %v1453 = vpack.c.bf16 %v1245, %v1241
  %v1454 = vpack.c.bf16 %v1246, %v1242
  %v1455 = vpack.c.bf16 %v1247, %v1243
  %v1456 = vpack.c.bf16 %v1252, %v1248
  %v1457 = vpack.c.bf16 %v1253, %v1249
  %v1458 = vpack.c.bf16 %v1254, %v1250
  %v1459 = vpack.c.bf16 %v1255, %v1251
  %v1460 = vpack.c.bf16 %v1260, %v1256
  %v1461 = vpack.c.bf16 %v1261, %v1257
  %v1462 = vpack.c.bf16 %v1262, %v1258
  %v1463 = vpack.c.bf16 %v1263, %v1259
  %v1464 = vpack.c.bf16 %v1268, %v1264
  %v1465 = vpack.c.bf16 %v1269, %v1265
  %v1466 = vpack.c.bf16 %v1270, %v1266
  %v1467 = vpack.c.bf16 %v1271, %v1267
  %v1468 = vpack.c.bf16 %v1276, %v1272
  %v1469 = vpack.c.bf16 %v1277, %v1273
  %v1470 = vpack.c.bf16 %v1278, %v1274
  %v1471 = vpack.c.bf16 %v1279, %v1275
  %v1472 = vpack.c.bf16 %v1284, %v1280
  %v1473 = vpack.c.bf16 %v1285, %v1281
  %v1474 = vpack.c.bf16 %v1286, %v1282
  %v1475 = vpack.c.bf16 %v1287, %v1283
  %v1476 = vpack.c.bf16 %v1292, %v1288
  %v1477 = vpack.c.bf16 %v1293, %v1289
  %v1478 = vpack.c.bf16 %v1294, %v1290
  %v1479 = vpack.c.bf16 %v1295, %v1291
  %v1480 = vpack.c.bf16 %v1300, %v1296
  %v1481 = vpack.c.bf16 %v1301, %v1297
  %v1482 = vpack.c.bf16 %v1302, %v1298
  %v1483 = vpack.c.bf16 %v1303, %v1299
  %v1484 = vpack.c.bf16 %v1308, %v1304
  %v1485 = vpack.c.bf16 %v1309, %v1305
  %v1486 = vpack.c.bf16 %v1310, %v1306
  %v1487 = vpack.c.bf16 %v1311, %v1307
  %v1488 = vpack.c.bf16 %v1316, %v1312
  %v1489 = vpack.c.bf16 %v1317, %v1313
  %v1490 = vpack.c.bf16 %v1318, %v1314
  %v1491 = vpack.c.bf16 %v1319, %v1315
  %v1492 = vpack.c.bf16 %v1324, %v1320
  %v1493 = vpack.c.bf16 %v1325, %v1321
  %v1494 = vpack.c.bf16 %v1326, %v1322
  %v1495 = vpack.c.bf16 %v1327, %v1323
  %v1496 = vpack.c.bf16 %v1332, %v1328
  %v1497 = vpack.c.bf16 %v1333, %v1329
  %v1498 = vpack.c.bf16 %v1334, %v1330
  %v1499 = vpack.c.bf16 %v1335, %v1331
  %v1500 = vpack.c.bf16 %v1340, %v1336
  %v1501 = vpack.c.bf16 %v1341, %v1337
  %v1502 = vpack.c.bf16 %v1342, %v1338
  %v1503 = vpack.c.bf16 %v1343, %v1339
  %v1504 = vpack.c.bf16 %v1348, %v1344
  %v1505 = vpack.c.bf16 %v1349, %v1345
  %v1506 = vpack.c.bf16 %v1350, %v1346
  %v1507 = vpack.c.bf16 %v1351, %v1347
  %v1508 = vpack.c.bf16 %v1356, %v1352
  %v1509 = vpack.c.bf16 %v1357, %v1353
  %v1510 = vpack.c.bf16 %v1358, %v1354
  %v1511 = vpack.c.bf16 %v1359, %v1355
  %v1512 = vpack.c.bf16 %v1364, %v1360
  %v1513 = vpack.c.bf16 %v1365, %v1361
  %v1514 = vpack.c.bf16 %v1366, %v1362
  %v1515 = vpack.c.bf16 %v1367, %v1363
  %v1516 = vpack.c.bf16 %v1372, %v1368
  %v1517 = vpack.c.bf16 %v1373, %v1369
  %v1518 = vpack.c.bf16 %v1374, %v1370
  %v1519 = vpack.c.bf16 %v1375, %v1371
  %v1520 = vpack.c.bf16 %v1380, %v1376
  %v1521 = vpack.c.bf16 %v1381, %v1377
  %v1522 = vpack.c.bf16 %v1382, %v1378
  %v1523 = vpack.c.bf16 %v1383, %v1379
  %v1524 = vpack.c.bf16 %v1388, %v1384
  %v1525 = vpack.c.bf16 %v1389, %v1385
  %v1526 = vpack.c.bf16 %v1390, %v1386
  %v1527 = vpack.c.bf16 %v1391, %v1387
  %v1528 = vpack.c.bf16 %v1396, %v1392
  %v1529 = vpack.c.bf16 %v1397, %v1393
  %v1530 = vpack.c.bf16 %v1398, %v1394
  %v1531 = vpack.c.bf16 %v1399, %v1395
  %v1532 = vpack.c.bf16 %v1404, %v1400
  %v1533 = vpack.c.bf16 %v1405, %v1401
  %v1534 = vpack.c.bf16 %v1406, %v1402
  %v1535 = vpack.c.bf16 %v1407, %v1403
  %1536 = vmatprep.subr.bf16.mxu0 %v1469
  %1537 = vmatpush1.bf16.msra.mxu0 %v1468
  %1538 = vmatprep.subr.bf16.mxu0 %v1465
  %1539 = vmatpush1.bf16.msra.mxu0 %v1464
  %1540 = vmatprep.subr.bf16.mxu0 %v1461
  %1541 = vmatpush1.bf16.msra.mxu0 %v1460
  %1542 = vmatprep.subr.bf16.mxu0 %v1457
  %1543 = vmatpush1.bf16.msra.mxu0 %v1456
  %1544 = vmatprep.subr.bf16.mxu0 %v1453
  %1545 = vmatpush1.bf16.msra.mxu0 %v1452
  %1546 = vmatprep.subr.bf16.mxu0 %v1449
  %1547 = vmatpush1.bf16.msra.mxu0 %v1448
  %1548 = vmatprep.subr.bf16.mxu0 %v1445
  %1549 = vmatpush1.bf16.msra.mxu0 %v1444
  %1550 = vmatprep.subr.bf16.mxu0 %v1441
  %1551 = vmatpush1.bf16.msra.mxu0 %v1440
  %1552 = vmatprep.subr.bf16.mxu0 0
  %1553 = vmatpush2.bf16.msra.mxu0 0
  %1554 = vmatprep.subr.bf16.mxu0 0
  %1555 = vmatpush2.bf16.msra.mxu0 0
  %1556 = vmatprep.subr.bf16.mxu0 0
  %1557 = vmatpush2.bf16.msra.mxu0 0
  %1558 = vmatprep.subr.bf16.mxu0 0
  %1559 = vmatpush2.bf16.msra.mxu0 0
  %1560 = vmatprep.subr.bf16.mxu0 0
  %1561 = vmatpush2.bf16.msra.mxu0 0
  %1562 = vmatprep.subr.bf16.mxu0 0
  %1563 = vmatpush2.bf16.msra.mxu0 0
  %1564 = vmatprep.subr.bf16.mxu0 0
  %1565 = vmatpush2.bf16.msra.mxu0 0
  %1566 = vmatprep.subr.bf16.mxu0 0
  %1567 = vmatpush2.bf16.msra.mxu0 0
  %1568 = vmatprep.mubr.bf16.mxu0 0
  %1569 = vmatmul.mubr.bf16.gmra.mxu0 %v1140
  %v1570 = vpop.f32.mrf.mxu0
  %v1571 = vadd.f32 0.0, %v1570
  %v1572 = vpop.f32.mrf.mxu0
  %v1573 = vadd.f32 0.0, %v1572
  %v1574 = vpop.f32.mrf.mxu0
  %v1575 = vadd.f32 0.0, %v1574
  %v1576 = vpop.f32.mrf.mxu0
  %v1577 = vadd.f32 0.0, %v1576
  %1578 = vmatprep.mubr.bf16.mxu0 0
  %1579 = vmatmul.mubr.bf16.gmra.mxu0 %v1141
  %v1580 = vpop.f32.mrf.mxu0
  %v1581 = vadd.f32 0.0, %v1580
  %v1582 = vpop.f32.mrf.mxu0
  %v1583 = vadd.f32 0.0, %v1582
  %v1584 = vpop.f32.mrf.mxu0
  %v1585 = vadd.f32 0.0, %v1584
  %v1586 = vpop.f32.mrf.mxu0
  %v1587 = vadd.f32 0.0, %v1586
  %1588 = vmatprep.mubr.bf16.mxu0 0
  %1589 = vmatmul.mubr.bf16.gmra.mxu0 %v1142
  %v1590 = vpop.f32.mrf.mxu0
  %v1591 = vadd.f32 0.0, %v1590
  %v1592 = vpop.f32.mrf.mxu0
  %v1593 = vadd.f32 0.0, %v1592
  %v1594 = vpop.f32.mrf.mxu0
  %v1595 = vadd.f32 0.0, %v1594
  %v1596 = vpop.f32.mrf.mxu0
  %v1597 = vadd.f32 0.0, %v1596
  %1598 = vmatprep.mubr.bf16.mxu0 0
  %1599 = vmatmul.mubr.bf16.gmra.mxu0 %v1143
  %v1600 = vpop.f32.mrf.mxu0
  %v1601 = vadd.f32 0.0, %v1600
  %v1602 = vpop.f32.mrf.mxu0
  %v1603 = vadd.f32 0.0, %v1602
  %v1604 = vpop.f32.mrf.mxu0
  %v1605 = vadd.f32 0.0, %v1604
  %v1606 = vpop.f32.mrf.mxu0
  %v1607 = vadd.f32 0.0, %v1606
  %1608 = vdwg.mxu0
  %1609 = vmatprep.subr.bf16.mxu0 %v1471
  %1610 = vmatpush1.bf16.msra.mxu0 %v1470
  %1611 = vmatprep.subr.bf16.mxu0 %v1467
  %1612 = vmatpush1.bf16.msra.mxu0 %v1466
  %1613 = vmatprep.subr.bf16.mxu0 %v1463
  %1614 = vmatpush1.bf16.msra.mxu0 %v1462
  %1615 = vmatprep.subr.bf16.mxu0 %v1459
  %1616 = vmatpush1.bf16.msra.mxu0 %v1458
  %1617 = vmatprep.subr.bf16.mxu0 %v1455
  %1618 = vmatpush1.bf16.msra.mxu0 %v1454
  %1619 = vmatprep.subr.bf16.mxu0 %v1451
  %1620 = vmatpush1.bf16.msra.mxu0 %v1450
  %1621 = vmatprep.subr.bf16.mxu0 %v1447
  %1622 = vmatpush1.bf16.msra.mxu0 %v1446
  %1623 = vmatprep.subr.bf16.mxu0 %v1443
  %1624 = vmatpush1.bf16.msra.mxu0 %v1442
  %1625 = vmatprep.subr.bf16.mxu0 0
  %1626 = vmatpush2.bf16.msra.mxu0 0
  %1627 = vmatprep.subr.bf16.mxu0 0
  %1628 = vmatpush2.bf16.msra.mxu0 0
  %1629 = vmatprep.subr.bf16.mxu0 0
  %1630 = vmatpush2.bf16.msra.mxu0 0
  %1631 = vmatprep.subr.bf16.mxu0 0
  %1632 = vmatpush2.bf16.msra.mxu0 0
  %1633 = vmatprep.subr.bf16.mxu0 0
  %1634 = vmatpush2.bf16.msra.mxu0 0
  %1635 = vmatprep.subr.bf16.mxu0 0
  %1636 = vmatpush2.bf16.msra.mxu0 0
  %1637 = vmatprep.subr.bf16.mxu0 0
  %1638 = vmatpush2.bf16.msra.mxu0 0
  %1639 = vmatprep.subr.bf16.mxu0 0
  %1640 = vmatpush2.bf16.msra.mxu0 0
  %1641 = vmatprep.mubr.bf16.mxu0 0
  %1642 = vmatmul.mubr.bf16.gmra.mxu0 %v1140
  %v1643 = vpop.f32.mrf.mxu0
  %v1644 = vadd.f32 0.0, %v1643
  %v1645 = vpop.f32.mrf.mxu0
  %v1646 = vadd.f32 0.0, %v1645
  %v1647 = vpop.f32.mrf.mxu0
  %v1648 = vadd.f32 0.0, %v1647
  %v1649 = vpop.f32.mrf.mxu0
  %v1650 = vadd.f32 0.0, %v1649
  %1651 = vmatprep.mubr.bf16.mxu0 0
  %1652 = vmatmul.mubr.bf16.gmra.mxu0 %v1141
  %v1653 = vpop.f32.mrf.mxu0
  %v1654 = vadd.f32 0.0, %v1653
  %v1655 = vpop.f32.mrf.mxu0
  %v1656 = vadd.f32 0.0, %v1655
  %v1657 = vpop.f32.mrf.mxu0
  %v1658 = vadd.f32 0.0, %v1657
  %v1659 = vpop.f32.mrf.mxu0
  %v1660 = vadd.f32 0.0, %v1659
  %1661 = vmatprep.mubr.bf16.mxu0 0
  %1662 = vmatmul.mubr.bf16.gmra.mxu0 %v1142
  %v1663 = vpop.f32.mrf.mxu0
  %v1664 = vadd.f32 0.0, %v1663
  %v1665 = vpop.f32.mrf.mxu0
  %v1666 = vadd.f32 0.0, %v1665
  %v1667 = vpop.f32.mrf.mxu0
  %v1668 = vadd.f32 0.0, %v1667
  %v1669 = vpop.f32.mrf.mxu0
  %v1670 = vadd.f32 0.0, %v1669
  %1671 = vmatprep.mubr.bf16.mxu0 0
  %1672 = vmatmul.mubr.bf16.gmra.mxu0 %v1143
  %v1673 = vpop.f32.mrf.mxu0
  %v1674 = vadd.f32 0.0, %v1673
  %v1675 = vpop.f32.mrf.mxu0
  %v1676 = vadd.f32 0.0, %v1675
  %v1677 = vpop.f32.mrf.mxu0
  %v1678 = vadd.f32 0.0, %v1677
  %v1679 = vpop.f32.mrf.mxu0
  %v1680 = vadd.f32 0.0, %v1679
  %1681 = vdwg.mxu0
  %1682 = vmatprep.subr.bf16.mxu0 %v1437
  %1683 = vmatpush1.bf16.msra.mxu0 %v1436
  %1684 = vmatprep.subr.bf16.mxu0 %v1433
  %1685 = vmatpush1.bf16.msra.mxu0 %v1432
  %1686 = vmatprep.subr.bf16.mxu0 %v1429
  %1687 = vmatpush1.bf16.msra.mxu0 %v1428
  %1688 = vmatprep.subr.bf16.mxu0 %v1425
  %1689 = vmatpush1.bf16.msra.mxu0 %v1424
  %1690 = vmatprep.subr.bf16.mxu0 %v1421
  %1691 = vmatpush1.bf16.msra.mxu0 %v1420
  %1692 = vmatprep.subr.bf16.mxu0 %v1417
  %1693 = vmatpush1.bf16.msra.mxu0 %v1416
  %1694 = vmatprep.subr.bf16.mxu0 %v1413
  %1695 = vmatpush1.bf16.msra.mxu0 %v1412
  %1696 = vmatprep.subr.bf16.mxu0 %v1409
  %1697 = vmatpush1.bf16.msra.mxu0 %v1408
  %1698 = vmatprep.subr.bf16.mxu0 0
  %1699 = vmatpush2.bf16.msra.mxu0 0
  %1700 = vmatprep.subr.bf16.mxu0 0
  %1701 = vmatpush2.bf16.msra.mxu0 0
  %1702 = vmatprep.subr.bf16.mxu0 0
  %1703 = vmatpush2.bf16.msra.mxu0 0
  %1704 = vmatprep.subr.bf16.mxu0 0
  %1705 = vmatpush2.bf16.msra.mxu0 0
  %1706 = vmatprep.subr.bf16.mxu0 0
  %1707 = vmatpush2.bf16.msra.mxu0 0
  %1708 = vmatprep.subr.bf16.mxu0 0
  %1709 = vmatpush2.bf16.msra.mxu0 0
  %1710 = vmatprep.subr.bf16.mxu0 0
  %1711 = vmatpush2.bf16.msra.mxu0 0
  %1712 = vmatprep.subr.bf16.mxu0 0
  %1713 = vmatpush2.bf16.msra.mxu0 0
  %1714 = vmatprep.mubr.bf16.mxu0 0
  %1715 = vmatmul.mubr.bf16.gmra.mxu0 %v1136
  %v1716 = vpop.f32.mrf.mxu0
  %v1717 = vadd.f32 %v1571, %v1716
  %v1718 = vpop.f32.mrf.mxu0
  %v1719 = vadd.f32 %v1573, %v1718
  %v1720 = vpop.f32.mrf.mxu0
  %v1721 = vadd.f32 %v1575, %v1720
  %v1722 = vpop.f32.mrf.mxu0
  %v1723 = vadd.f32 %v1577, %v1722
  %1724 = vmatprep.mubr.bf16.mxu0 0
  %1725 = vmatmul.mubr.bf16.gmra.mxu0 %v1137
  %v1726 = vpop.f32.mrf.mxu0
  %v1727 = vadd.f32 %v1581, %v1726
  %v1728 = vpop.f32.mrf.mxu0
  %v1729 = vadd.f32 %v1583, %v1728
  %v1730 = vpop.f32.mrf.mxu0
  %v1731 = vadd.f32 %v1585, %v1730
  %v1732 = vpop.f32.mrf.mxu0
  %v1733 = vadd.f32 %v1587, %v1732
  %1734 = vmatprep.mubr.bf16.mxu0 0
  %1735 = vmatmul.mubr.bf16.gmra.mxu0 %v1138
  %v1736 = vpop.f32.mrf.mxu0
  %v1737 = vadd.f32 %v1591, %v1736
  %v1738 = vpop.f32.mrf.mxu0
  %v1739 = vadd.f32 %v1593, %v1738
  %v1740 = vpop.f32.mrf.mxu0
  %v1741 = vadd.f32 %v1595, %v1740
  %v1742 = vpop.f32.mrf.mxu0
  %v1743 = vadd.f32 %v1597, %v1742
  %1744 = vmatprep.mubr.bf16.mxu0 0
  %1745 = vmatmul.mubr.bf16.gmra.mxu0 %v1139
  %v1746 = vpop.f32.mrf.mxu0
  %v1747 = vadd.f32 %v1601, %v1746
  %v1748 = vpop.f32.mrf.mxu0
  %v1749 = vadd.f32 %v1603, %v1748
  %v1750 = vpop.f32.mrf.mxu0
  %v1751 = vadd.f32 %v1605, %v1750
  %v1752 = vpop.f32.mrf.mxu0
  %v1753 = vadd.f32 %v1607, %v1752
  %1754 = vdwg.mxu0
  %1755 = vmatprep.subr.bf16.mxu0 %v1439
  %1756 = vmatpush1.bf16.msra.mxu0 %v1438
  %1757 = vmatprep.subr.bf16.mxu0 %v1435
  %1758 = vmatpush1.bf16.msra.mxu0 %v1434
  %1759 = vmatprep.subr.bf16.mxu0 %v1431
  %1760 = vmatpush1.bf16.msra.mxu0 %v1430
  %1761 = vmatprep.subr.bf16.mxu0 %v1427
  %1762 = vmatpush1.bf16.msra.mxu0 %v1426
  %1763 = vmatprep.subr.bf16.mxu0 %v1423
  %1764 = vmatpush1.bf16.msra.mxu0 %v1422
  %1765 = vmatprep.subr.bf16.mxu0 %v1419
  %1766 = vmatpush1.bf16.msra.mxu0 %v1418
  %1767 = vmatprep.subr.bf16.mxu0 %v1415
  %1768 = vmatpush1.bf16.msra.mxu0 %v1414
  %1769 = vmatprep.subr.bf16.mxu0 %v1411
  %1770 = vmatpush1.bf16.msra.mxu0 %v1410
  %1771 = vmatprep.subr.bf16.mxu0 0
  %1772 = vmatpush2.bf16.msra.mxu0 0
  %1773 = vmatprep.subr.bf16.mxu0 0
  %1774 = vmatpush2.bf16.msra.mxu0 0
  %1775 = vmatprep.subr.bf16.mxu0 0
  %1776 = vmatpush2.bf16.msra.mxu0 0
  %1777 = vmatprep.subr.bf16.mxu0 0
  %1778 = vmatpush2.bf16.msra.mxu0 0
  %1779 = vmatprep.subr.bf16.mxu0 0
  %1780 = vmatpush2.bf16.msra.mxu0 0
  %1781 = vmatprep.subr.bf16.mxu0 0
  %1782 = vmatpush2.bf16.msra.mxu0 0
  %1783 = vmatprep.subr.bf16.mxu0 0
  %1784 = vmatpush2.bf16.msra.mxu0 0
  %1785 = vmatprep.subr.bf16.mxu0 0
  %1786 = vmatpush2.bf16.msra.mxu0 0
  %1787 = vmatprep.mubr.bf16.mxu0 0
  %1788 = vmatmul.mubr.bf16.gmra.mxu0 %v1136
  %v1789 = vpop.f32.mrf.mxu0
  %v1790 = vadd.f32 %v1644, %v1789
  %v1791 = vpop.f32.mrf.mxu0
  %v1792 = vadd.f32 %v1646, %v1791
  %v1793 = vpop.f32.mrf.mxu0
  %v1794 = vadd.f32 %v1648, %v1793
  %v1795 = vpop.f32.mrf.mxu0
  %v1796 = vadd.f32 %v1650, %v1795
  %1797 = vmatprep.mubr.bf16.mxu0 0
  %1798 = vmatmul.mubr.bf16.gmra.mxu0 %v1137
  %v1799 = vpop.f32.mrf.mxu0
  %v1800 = vadd.f32 %v1654, %v1799
  %v1801 = vpop.f32.mrf.mxu0
  %v1802 = vadd.f32 %v1656, %v1801
  %v1803 = vpop.f32.mrf.mxu0
  %v1804 = vadd.f32 %v1658, %v1803
  %v1805 = vpop.f32.mrf.mxu0
  %v1806 = vadd.f32 %v1660, %v1805
  %1807 = vmatprep.mubr.bf16.mxu0 0
  %1808 = vmatmul.mubr.bf16.gmra.mxu0 %v1138
  %v1809 = vpop.f32.mrf.mxu0
  %v1810 = vadd.f32 %v1664, %v1809
  %v1811 = vpop.f32.mrf.mxu0
  %v1812 = vadd.f32 %v1666, %v1811
  %v1813 = vpop.f32.mrf.mxu0
  %v1814 = vadd.f32 %v1668, %v1813
  %v1815 = vpop.f32.mrf.mxu0
  %v1816 = vadd.f32 %v1670, %v1815
  %1817 = vmatprep.mubr.bf16.mxu0 0
  %1818 = vmatmul.mubr.bf16.gmra.mxu0 %v1139
  %v1819 = vpop.f32.mrf.mxu0
  %v1820 = vadd.f32 %v1674, %v1819
  %v1821 = vpop.f32.mrf.mxu0
  %v1822 = vadd.f32 %v1676, %v1821
  %v1823 = vpop.f32.mrf.mxu0
  %v1824 = vadd.f32 %v1678, %v1823
  %v1825 = vpop.f32.mrf.mxu0
  %v1826 = vadd.f32 %v1680, %v1825
  %1827 = vdwg.mxu0
  %1828 = vmatprep.subr.bf16.mxu0 %v1501
  %1829 = vmatpush1.bf16.msra.mxu0 %v1500
  %1830 = vmatprep.subr.bf16.mxu0 %v1497
  %1831 = vmatpush1.bf16.msra.mxu0 %v1496
  %1832 = vmatprep.subr.bf16.mxu0 %v1493
  %1833 = vmatpush1.bf16.msra.mxu0 %v1492
  %1834 = vmatprep.subr.bf16.mxu0 %v1489
  %1835 = vmatpush1.bf16.msra.mxu0 %v1488
  %1836 = vmatprep.subr.bf16.mxu0 %v1485
  %1837 = vmatpush1.bf16.msra.mxu0 %v1484
  %1838 = vmatprep.subr.bf16.mxu0 %v1481
  %1839 = vmatpush1.bf16.msra.mxu0 %v1480
  %1840 = vmatprep.subr.bf16.mxu0 %v1477
  %1841 = vmatpush1.bf16.msra.mxu0 %v1476
  %1842 = vmatprep.subr.bf16.mxu0 %v1473
  %1843 = vmatpush1.bf16.msra.mxu0 %v1472
  %1844 = vmatprep.subr.bf16.mxu0 0
  %1845 = vmatpush2.bf16.msra.mxu0 0
  %1846 = vmatprep.subr.bf16.mxu0 0
  %1847 = vmatpush2.bf16.msra.mxu0 0
  %1848 = vmatprep.subr.bf16.mxu0 0
  %1849 = vmatpush2.bf16.msra.mxu0 0
  %1850 = vmatprep.subr.bf16.mxu0 0
  %1851 = vmatpush2.bf16.msra.mxu0 0
  %1852 = vmatprep.subr.bf16.mxu0 0
  %1853 = vmatpush2.bf16.msra.mxu0 0
  %1854 = vmatprep.subr.bf16.mxu0 0
  %1855 = vmatpush2.bf16.msra.mxu0 0
  %1856 = vmatprep.subr.bf16.mxu0 0
  %1857 = vmatpush2.bf16.msra.mxu0 0
  %1858 = vmatprep.subr.bf16.mxu0 0
  %1859 = vmatpush2.bf16.msra.mxu0 0
  %1860 = vmatprep.mubr.bf16.mxu0 0
  %1861 = vmatmul.mubr.bf16.gmra.mxu0 %v1144
  %v1862 = vpop.f32.mrf.mxu0
  %v1863 = vadd.f32 0.0, %v1862
  %v1864 = vpop.f32.mrf.mxu0
  %v1865 = vadd.f32 0.0, %v1864
  %v1866 = vpop.f32.mrf.mxu0
  %v1867 = vadd.f32 0.0, %v1866
  %v1868 = vpop.f32.mrf.mxu0
  %v1869 = vadd.f32 0.0, %v1868
  %1870 = vmatprep.mubr.bf16.mxu0 0
  %1871 = vmatmul.mubr.bf16.gmra.mxu0 %v1145
  %v1872 = vpop.f32.mrf.mxu0
  %v1873 = vadd.f32 0.0, %v1872
  %v1874 = vpop.f32.mrf.mxu0
  %v1875 = vadd.f32 0.0, %v1874
  %v1876 = vpop.f32.mrf.mxu0
  %v1877 = vadd.f32 0.0, %v1876
  %v1878 = vpop.f32.mrf.mxu0
  %v1879 = vadd.f32 0.0, %v1878
  %1880 = vmatprep.mubr.bf16.mxu0 0
  %1881 = vmatmul.mubr.bf16.gmra.mxu0 %v1146
  %v1882 = vpop.f32.mrf.mxu0
  %v1883 = vadd.f32 0.0, %v1882
  %v1884 = vpop.f32.mrf.mxu0
  %v1885 = vadd.f32 0.0, %v1884
  %v1886 = vpop.f32.mrf.mxu0
  %v1887 = vadd.f32 0.0, %v1886
  %v1888 = vpop.f32.mrf.mxu0
  %v1889 = vadd.f32 0.0, %v1888
  %1890 = vmatprep.mubr.bf16.mxu0 0
  %1891 = vmatmul.mubr.bf16.gmra.mxu0 %v1147
  %v1892 = vpop.f32.mrf.mxu0
  %v1893 = vadd.f32 0.0, %v1892
  %v1894 = vpop.f32.mrf.mxu0
  %v1895 = vadd.f32 0.0, %v1894
  %v1896 = vpop.f32.mrf.mxu0
  %v1897 = vadd.f32 0.0, %v1896
  %v1898 = vpop.f32.mrf.mxu0
  %v1899 = vadd.f32 0.0, %v1898
  %1900 = vdwg.mxu0
  %1901 = vmatprep.subr.bf16.mxu0 %v1503
  %1902 = vmatpush1.bf16.msra.mxu0 %v1502
  %1903 = vmatprep.subr.bf16.mxu0 %v1499
  %1904 = vmatpush1.bf16.msra.mxu0 %v1498
  %1905 = vmatprep.subr.bf16.mxu0 %v1495
  %1906 = vmatpush1.bf16.msra.mxu0 %v1494
  %1907 = vmatprep.subr.bf16.mxu0 %v1491
  %1908 = vmatpush1.bf16.msra.mxu0 %v1490
  %1909 = vmatprep.subr.bf16.mxu0 %v1487
  %1910 = vmatpush1.bf16.msra.mxu0 %v1486
  %1911 = vmatprep.subr.bf16.mxu0 %v1483
  %1912 = vmatpush1.bf16.msra.mxu0 %v1482
  %1913 = vmatprep.subr.bf16.mxu0 %v1479
  %1914 = vmatpush1.bf16.msra.mxu0 %v1478
  %1915 = vmatprep.subr.bf16.mxu0 %v1475
  %1916 = vmatpush1.bf16.msra.mxu0 %v1474
  %1917 = vmatprep.subr.bf16.mxu0 0
  %1918 = vmatpush2.bf16.msra.mxu0 0
  %1919 = vmatprep.subr.bf16.mxu0 0
  %1920 = vmatpush2.bf16.msra.mxu0 0
  %1921 = vmatprep.subr.bf16.mxu0 0
  %1922 = vmatpush2.bf16.msra.mxu0 0
  %1923 = vmatprep.subr.bf16.mxu0 0
  %1924 = vmatpush2.bf16.msra.mxu0 0
  %1925 = vmatprep.subr.bf16.mxu0 0
  %1926 = vmatpush2.bf16.msra.mxu0 0
  %1927 = vmatprep.subr.bf16.mxu0 0
  %1928 = vmatpush2.bf16.msra.mxu0 0
  %1929 = vmatprep.subr.bf16.mxu0 0
  %1930 = vmatpush2.bf16.msra.mxu0 0
  %1931 = vmatprep.subr.bf16.mxu0 0
  %1932 = vmatpush2.bf16.msra.mxu0 0
  %1933 = vmatprep.mubr.bf16.mxu0 0
  %1934 = vmatmul.mubr.bf16.gmra.mxu0 %v1144
  %v1935 = vpop.f32.mrf.mxu0
  %v1936 = vadd.f32 0.0, %v1935
  %v1937 = vpop.f32.mrf.mxu0
  %v1938 = vadd.f32 0.0, %v1937
  %v1939 = vpop.f32.mrf.mxu0
  %v1940 = vadd.f32 0.0, %v1939
  %v1941 = vpop.f32.mrf.mxu0
  %v1942 = vadd.f32 0.0, %v1941
  %1943 = vmatprep.mubr.bf16.mxu0 0
  %1944 = vmatmul.mubr.bf16.gmra.mxu0 %v1145
  %v1945 = vpop.f32.mrf.mxu0
  %v1946 = vadd.f32 0.0, %v1945
  %v1947 = vpop.f32.mrf.mxu0
  %v1948 = vadd.f32 0.0, %v1947
  %v1949 = vpop.f32.mrf.mxu0
  %v1950 = vadd.f32 0.0, %v1949
  %v1951 = vpop.f32.mrf.mxu0
  %v1952 = vadd.f32 0.0, %v1951
  %1953 = vmatprep.mubr.bf16.mxu0 0
  %1954 = vmatmul.mubr.bf16.gmra.mxu0 %v1146
  %v1955 = vpop.f32.mrf.mxu0
  %v1956 = vadd.f32 0.0, %v1955
  %v1957 = vpop.f32.mrf.mxu0
  %v1958 = vadd.f32 0.0, %v1957
  %v1959 = vpop.f32.mrf.mxu0
  %v1960 = vadd.f32 0.0, %v1959
  %v1961 = vpop.f32.mrf.mxu0
  %v1962 = vadd.f32 0.0, %v1961
  %1963 = vmatprep.mubr.bf16.mxu0 0
  %1964 = vmatmul.mubr.bf16.gmra.mxu0 %v1147
  %v1965 = vpop.f32.mrf.mxu0
  %v1966 = vadd.f32 0.0, %v1965
  %v1967 = vpop.f32.mrf.mxu0
  %v1968 = vadd.f32 0.0, %v1967
  %v1969 = vpop.f32.mrf.mxu0
  %v1970 = vadd.f32 0.0, %v1969
  %v1971 = vpop.f32.mrf.mxu0
  %v1972 = vadd.f32 0.0, %v1971
  %1973 = vdwg.mxu0
  %v1974 = vadd.f32 %v1717, %v1863
  %v1975 = vadd.f32 %v1719, %v1865
  %v1976 = vadd.f32 %v1790, %v1936
  %v1977 = vadd.f32 %v1792, %v1938
  %v1978 = vadd.f32 %v1721, %v1867
  %v1979 = vadd.f32 %v1723, %v1869
  %v1980 = vadd.f32 %v1794, %v1940
  %v1981 = vadd.f32 %v1796, %v1942
  %v1982 = vadd.f32 %v1727, %v1873
  %v1983 = vadd.f32 %v1729, %v1875
  %v1984 = vadd.f32 %v1800, %v1946
  %v1985 = vadd.f32 %v1802, %v1948
  %v1986 = vadd.f32 %v1731, %v1877
  %v1987 = vadd.f32 %v1733, %v1879
  %v1988 = vadd.f32 %v1804, %v1950
  %v1989 = vadd.f32 %v1806, %v1952
  %v1990 = vadd.f32 %v1737, %v1883
  %v1991 = vadd.f32 %v1739, %v1885
  %v1992 = vadd.f32 %v1810, %v1956
  %v1993 = vadd.f32 %v1812, %v1958
  %v1994 = vadd.f32 %v1741, %v1887
  %v1995 = vadd.f32 %v1743, %v1889
  %v1996 = vadd.f32 %v1814, %v1960
  %v1997 = vadd.f32 %v1816, %v1962
  %v1998 = vadd.f32 %v1747, %v1893
  %v1999 = vadd.f32 %v1749, %v1895
  %v2000 = vadd.f32 %v1820, %v1966
  %v2001 = vadd.f32 %v1822, %v1968
  %v2002 = vadd.f32 %v1751, %v1897
  %v2003 = vadd.f32 %v1753, %v1899
  %v2004 = vadd.f32 %v1824, %v1970
  %v2005 = vadd.f32 %v1826, %v1972
  %2006 = vmatprep.subr.bf16.mxu0 %v1533
  %2007 = vmatpush1.bf16.msra.mxu0 %v1532
  %2008 = vmatprep.subr.bf16.mxu0 %v1529
  %2009 = vmatpush1.bf16.msra.mxu0 %v1528
  %2010 = vmatprep.subr.bf16.mxu0 %v1525
  %2011 = vmatpush1.bf16.msra.mxu0 %v1524
  %2012 = vmatprep.subr.bf16.mxu0 %v1521
  %2013 = vmatpush1.bf16.msra.mxu0 %v1520
  %2014 = vmatprep.subr.bf16.mxu0 %v1517
  %2015 = vmatpush1.bf16.msra.mxu0 %v1516
  %2016 = vmatprep.subr.bf16.mxu0 %v1513
  %2017 = vmatpush1.bf16.msra.mxu0 %v1512
  %2018 = vmatprep.subr.bf16.mxu0 %v1509
  %2019 = vmatpush1.bf16.msra.mxu0 %v1508
  %2020 = vmatprep.subr.bf16.mxu0 %v1505
  %2021 = vmatpush1.bf16.msra.mxu0 %v1504
  %2022 = vmatprep.subr.bf16.mxu0 0
  %2023 = vmatpush2.bf16.msra.mxu0 0
  %2024 = vmatprep.subr.bf16.mxu0 0
  %2025 = vmatpush2.bf16.msra.mxu0 0
  %2026 = vmatprep.subr.bf16.mxu0 0
  %2027 = vmatpush2.bf16.msra.mxu0 0
  %2028 = vmatprep.subr.bf16.mxu0 0
  %2029 = vmatpush2.bf16.msra.mxu0 0
  %2030 = vmatprep.subr.bf16.mxu0 0
  %2031 = vmatpush2.bf16.msra.mxu0 0
  %2032 = vmatprep.subr.bf16.mxu0 0
  %2033 = vmatpush2.bf16.msra.mxu0 0
  %2034 = vmatprep.subr.bf16.mxu0 0
  %2035 = vmatpush2.bf16.msra.mxu0 0
  %2036 = vmatprep.subr.bf16.mxu0 0
  %2037 = vmatpush2.bf16.msra.mxu0 0
  %2038 = vmatprep.mubr.bf16.mxu0 0
  %2039 = vmatmul.mubr.bf16.gmra.mxu0 %v1148
  %v2040 = vpop.f32.mrf.mxu0
  %v2041 = vadd.f32 0.0, %v2040
  %v2042 = vpop.f32.mrf.mxu0
  %v2043 = vadd.f32 0.0, %v2042
  %v2044 = vpop.f32.mrf.mxu0
  %v2045 = vadd.f32 0.0, %v2044
  %v2046 = vpop.f32.mrf.mxu0
  %v2047 = vadd.f32 0.0, %v2046
  %2048 = vmatprep.mubr.bf16.mxu0 0
  %2049 = vmatmul.mubr.bf16.gmra.mxu0 %v1149
  %v2050 = vpop.f32.mrf.mxu0
  %v2051 = vadd.f32 0.0, %v2050
  %v2052 = vpop.f32.mrf.mxu0
  %v2053 = vadd.f32 0.0, %v2052
  %v2054 = vpop.f32.mrf.mxu0
  %v2055 = vadd.f32 0.0, %v2054
  %v2056 = vpop.f32.mrf.mxu0
  %v2057 = vadd.f32 0.0, %v2056
  %2058 = vmatprep.mubr.bf16.mxu0 0
  %2059 = vmatmul.mubr.bf16.gmra.mxu0 %v1150
  %v2060 = vpop.f32.mrf.mxu0
  %v2061 = vadd.f32 0.0, %v2060
  %v2062 = vpop.f32.mrf.mxu0
  %v2063 = vadd.f32 0.0, %v2062
  %v2064 = vpop.f32.mrf.mxu0
  %v2065 = vadd.f32 0.0, %v2064
  %v2066 = vpop.f32.mrf.mxu0
  %v2067 = vadd.f32 0.0, %v2066
  %2068 = vmatprep.mubr.bf16.mxu0 0
  %2069 = vmatmul.mubr.bf16.gmra.mxu0 %v1151
  %v2070 = vpop.f32.mrf.mxu0
  %v2071 = vadd.f32 0.0, %v2070
  %v2072 = vpop.f32.mrf.mxu0
  %v2073 = vadd.f32 0.0, %v2072
  %v2074 = vpop.f32.mrf.mxu0
  %v2075 = vadd.f32 0.0, %v2074
  %v2076 = vpop.f32.mrf.mxu0
  %v2077 = vadd.f32 0.0, %v2076
  %2078 = vdwg.mxu0
  %2079 = vmatprep.subr.bf16.mxu0 %v1535
  %2080 = vmatpush1.bf16.msra.mxu0 %v1534
  %2081 = vmatprep.subr.bf16.mxu0 %v1531
  %2082 = vmatpush1.bf16.msra.mxu0 %v1530
  %2083 = vmatprep.subr.bf16.mxu0 %v1527
  %2084 = vmatpush1.bf16.msra.mxu0 %v1526
  %2085 = vmatprep.subr.bf16.mxu0 %v1523
  %2086 = vmatpush1.bf16.msra.mxu0 %v1522
  %2087 = vmatprep.subr.bf16.mxu0 %v1519
  %2088 = vmatpush1.bf16.msra.mxu0 %v1518
  %2089 = vmatprep.subr.bf16.mxu0 %v1515
  %2090 = vmatpush1.bf16.msra.mxu0 %v1514
  %2091 = vmatprep.subr.bf16.mxu0 %v1511
  %2092 = vmatpush1.bf16.msra.mxu0 %v1510
  %2093 = vmatprep.subr.bf16.mxu0 %v1507
  %2094 = vmatpush1.bf16.msra.mxu0 %v1506
  %2095 = vmatprep.subr.bf16.mxu0 0
  %2096 = vmatpush2.bf16.msra.mxu0 0
  %2097 = vmatprep.subr.bf16.mxu0 0
  %2098 = vmatpush2.bf16.msra.mxu0 0
  %2099 = vmatprep.subr.bf16.mxu0 0
  %2100 = vmatpush2.bf16.msra.mxu0 0
  %2101 = vmatprep.subr.bf16.mxu0 0
  %2102 = vmatpush2.bf16.msra.mxu0 0
  %2103 = vmatprep.subr.bf16.mxu0 0
  %2104 = vmatpush2.bf16.msra.mxu0 0
  %2105 = vmatprep.subr.bf16.mxu0 0
  %2106 = vmatpush2.bf16.msra.mxu0 0
  %2107 = vmatprep.subr.bf16.mxu0 0
  %2108 = vmatpush2.bf16.msra.mxu0 0
  %2109 = vmatprep.subr.bf16.mxu0 0
  %2110 = vmatpush2.bf16.msra.mxu0 0
  %2111 = vmatprep.mubr.bf16.mxu0 0
  %2112 = vmatmul.mubr.bf16.gmra.mxu0 %v1148
  %v2113 = vpop.f32.mrf.mxu0
  %v2114 = vadd.f32 0.0, %v2113
  %v2115 = vpop.f32.mrf.mxu0
  %v2116 = vadd.f32 0.0, %v2115
  %v2117 = vpop.f32.mrf.mxu0
  %v2118 = vadd.f32 0.0, %v2117
  %v2119 = vpop.f32.mrf.mxu0
  %v2120 = vadd.f32 0.0, %v2119
  %2121 = vmatprep.mubr.bf16.mxu0 0
  %2122 = vmatmul.mubr.bf16.gmra.mxu0 %v1149
  %v2123 = vpop.f32.mrf.mxu0
  %v2124 = vadd.f32 0.0, %v2123
  %v2125 = vpop.f32.mrf.mxu0
  %v2126 = vadd.f32 0.0, %v2125
  %v2127 = vpop.f32.mrf.mxu0
  %v2128 = vadd.f32 0.0, %v2127
  %v2129 = vpop.f32.mrf.mxu0
  %v2130 = vadd.f32 0.0, %v2129
  %2131 = vmatprep.mubr.bf16.mxu0 0
  %2132 = vmatmul.mubr.bf16.gmra.mxu0 %v1150
  %v2133 = vpop.f32.mrf.mxu0
  %v2134 = vadd.f32 0.0, %v2133
  %v2135 = vpop.f32.mrf.mxu0
  %v2136 = vadd.f32 0.0, %v2135
  %v2137 = vpop.f32.mrf.mxu0
  %v2138 = vadd.f32 0.0, %v2137
  %v2139 = vpop.f32.mrf.mxu0
  %v2140 = vadd.f32 0.0, %v2139
  %2141 = vmatprep.mubr.bf16.mxu0 0
  %2142 = vmatmul.mubr.bf16.gmra.mxu0 %v1151
  %v2143 = vpop.f32.mrf.mxu0
  %v2144 = vadd.f32 0.0, %v2143
  %v2145 = vpop.f32.mrf.mxu0
  %v2146 = vadd.f32 0.0, %v2145
  %v2147 = vpop.f32.mrf.mxu0
  %v2148 = vadd.f32 0.0, %v2147
  %v2149 = vpop.f32.mrf.mxu0
  %v2150 = vadd.f32 0.0, %v2149
  %2151 = vdwg.mxu0
  %v2152 = vadd.f32 %v1974, %v2041
  %v2153 = vadd.f32 %v1975, %v2043
  %v2154 = vadd.f32 %v1976, %v2114
  %v2155 = vadd.f32 %v1977, %v2116
  %v2156 = vadd.f32 %v1978, %v2045
  %v2157 = vadd.f32 %v1979, %v2047
  %v2158 = vadd.f32 %v1980, %v2118
  %v2159 = vadd.f32 %v1981, %v2120
  %v2160 = vadd.f32 %v1982, %v2051
  %v2161 = vadd.f32 %v1983, %v2053
  %v2162 = vadd.f32 %v1984, %v2124
  %v2163 = vadd.f32 %v1985, %v2126
  %v2164 = vadd.f32 %v1986, %v2055
  %v2165 = vadd.f32 %v1987, %v2057
  %v2166 = vadd.f32 %v1988, %v2128
  %v2167 = vadd.f32 %v1989, %v2130
  %v2168 = vadd.f32 %v1990, %v2061
  %v2169 = vadd.f32 %v1991, %v2063
  %v2170 = vadd.f32 %v1992, %v2134
  %v2171 = vadd.f32 %v1993, %v2136
  %v2172 = vadd.f32 %v1994, %v2065
  %v2173 = vadd.f32 %v1995, %v2067
  %v2174 = vadd.f32 %v1996, %v2138
  %v2175 = vadd.f32 %v1997, %v2140
  %v2176 = vadd.f32 %v1998, %v2071
  %v2177 = vadd.f32 %v1999, %v2073
  %v2178 = vadd.f32 %v2000, %v2144
  %v2179 = vadd.f32 %v2001, %v2146
  %v2180 = vadd.f32 %v2002, %v2075
  %v2181 = vadd.f32 %v2003, %v2077
  %v2182 = vadd.f32 %v2004, %v2148
  %v2183 = vadd.f32 %v2005, %v2150
  %v2184 = vld [vmem:[%s4] sm:$0xf]
  %v2186 = vlaneseq
  %v2187 = vshrl.u32 %v2186, 7
  %v2188 = vsub.s32 0, %v2187
  %v2189 = vrot.slane %v2184, %v2188
  %v2190 = vlaneseq
  %v2191 = vshrl.u32 %v2190, 7
  %v2192 = vsub.s32 1, %v2191
  %v2193 = vrot.slane %v2184, %v2192
  %v2194 = vlaneseq
  %v2195 = vshrl.u32 %v2194, 7
  %v2196 = vsub.s32 2, %v2195
  %v2197 = vrot.slane %v2184, %v2196
  %v2198 = vlaneseq
  %v2199 = vshrl.u32 %v2198, 7
  %v2200 = vsub.s32 3, %v2199
  %v2201 = vrot.slane %v2184, %v2200
  %v2206 = vadd.f32 %v2152, %v2189
  %v2207 = vadd.f32 %v2153, %v2193
  %v2208 = vadd.f32 %v2154, %v2197
  %v2209 = vadd.f32 %v2155, %v2201
  %v2210 = vadd.f32 %v2156, %v2189
  %v2211 = vadd.f32 %v2157, %v2193
  %v2212 = vadd.f32 %v2158, %v2197
  %v2213 = vadd.f32 %v2159, %v2201
  %v2214 = vadd.f32 %v2160, %v2189
  %v2215 = vadd.f32 %v2161, %v2193
  %v2216 = vadd.f32 %v2162, %v2197
  %v2217 = vadd.f32 %v2163, %v2201
  %v2218 = vadd.f32 %v2164, %v2189
  %v2219 = vadd.f32 %v2165, %v2193
  %v2220 = vadd.f32 %v2166, %v2197
  %v2221 = vadd.f32 %v2167, %v2201
  %v2222 = vadd.f32 %v2168, %v2189
  %v2223 = vadd.f32 %v2169, %v2193
  %v2224 = vadd.f32 %v2170, %v2197
  %v2225 = vadd.f32 %v2171, %v2201
  %v2226 = vadd.f32 %v2172, %v2189
  %v2227 = vadd.f32 %v2173, %v2193
  %v2228 = vadd.f32 %v2174, %v2197
  %v2229 = vadd.f32 %v2175, %v2201
  %v2230 = vadd.f32 %v2176, %v2189
  %v2231 = vadd.f32 %v2177, %v2193
  %v2232 = vadd.f32 %v2178, %v2197
  %v2233 = vadd.f32 %v2179, %v2201
  %v2234 = vadd.f32 %v2180, %v2189
  %v2235 = vadd.f32 %v2181, %v2193
  %v2236 = vadd.f32 %v2182, %v2197
  %v2237 = vadd.f32 %v2183, %v2201
  %v2238 = vmax.f32 %v2206, 0.0
  %v2239 = vmax.f32 %v2207, 0.0
  %v2240 = vmax.f32 %v2208, 0.0
  %v2241 = vmax.f32 %v2209, 0.0
  %v2242 = vmax.f32 %v2210, 0.0
  %v2243 = vmax.f32 %v2211, 0.0
  %v2244 = vmax.f32 %v2212, 0.0
  %v2245 = vmax.f32 %v2213, 0.0
  %v2246 = vmax.f32 %v2214, 0.0
  %v2247 = vmax.f32 %v2215, 0.0
  %v2248 = vmax.f32 %v2216, 0.0
  %v2249 = vmax.f32 %v2217, 0.0
  %v2250 = vmax.f32 %v2218, 0.0
  %v2251 = vmax.f32 %v2219, 0.0
  %v2252 = vmax.f32 %v2220, 0.0
  %v2253 = vmax.f32 %v2221, 0.0
  %v2254 = vmax.f32 %v2222, 0.0
  %v2255 = vmax.f32 %v2223, 0.0
  %v2256 = vmax.f32 %v2224, 0.0
  %v2257 = vmax.f32 %v2225, 0.0
  %v2258 = vmax.f32 %v2226, 0.0
  %v2259 = vmax.f32 %v2227, 0.0
  %v2260 = vmax.f32 %v2228, 0.0
  %v2261 = vmax.f32 %v2229, 0.0
  %v2262 = vmax.f32 %v2230, 0.0
  %v2263 = vmax.f32 %v2231, 0.0
  %v2264 = vmax.f32 %v2232, 0.0
  %v2265 = vmax.f32 %v2233, 0.0
  %v2266 = vmax.f32 %v2234, 0.0
  %v2267 = vmax.f32 %v2235, 0.0
  %v2268 = vmax.f32 %v2236, 0.0
  %v2269 = vmax.f32 %v2237, 0.0
  %v2270 = vpack.c.bf16 %v2242, %v2238
  %v2271 = vpack.c.bf16 %v2243, %v2239
  %v2272 = vpack.c.bf16 %v2244, %v2240
  %v2273 = vpack.c.bf16 %v2245, %v2241
  %v2274 = vpack.c.bf16 %v2250, %v2246
  %v2275 = vpack.c.bf16 %v2251, %v2247
  %v2276 = vpack.c.bf16 %v2252, %v2248
  %v2277 = vpack.c.bf16 %v2253, %v2249
  %v2278 = vpack.c.bf16 %v2258, %v2254
  %v2279 = vpack.c.bf16 %v2259, %v2255
  %v2280 = vpack.c.bf16 %v2260, %v2256
  %v2281 = vpack.c.bf16 %v2261, %v2257
  %v2282 = vpack.c.bf16 %v2266, %v2262
  %v2283 = vpack.c.bf16 %v2267, %v2263
  %v2284 = vpack.c.bf16 %v2268, %v2264
  %v2285 = vpack.c.bf16 %v2269, %v2265
  %v2286 = vld [vmem:[%s5] sm:$0xff]
  %v2287 = vld [vmem:[%s5 + $0x8] sm:$0xff]
  %v2288 = vld [vmem:[%s5 + $0x10] sm:$0xff]
  %v2289 = vld [vmem:[%s5 + $0x18] sm:$0xff]
  %v2290 = vld [vmem:[%s5 + $0x20] sm:$0xff]
  %v2291 = vld [vmem:[%s5 + $0x28] sm:$0xff]
  %v2292 = vld [vmem:[%s5 + $0x30] sm:$0xff]
  %v2293 = vld [vmem:[%s5 + $0x38] sm:$0xff]
  %v2294 = vld [vmem:[%s5 + $0x40] sm:$0xff]
  %v2295 = vld [vmem:[%s5 + $0x48] sm:$0xff]
  %v2296 = vld [vmem:[%s5 + $0x50] sm:$0xff]
  %v2297 = vld [vmem:[%s5 + $0x58] sm:$0xff]
  %v2298 = vld [vmem:[%s5 + $0x60] sm:$0xff]
  %v2299 = vld [vmem:[%s5 + $0x68] sm:$0xff]
  %v2300 = vld [vmem:[%s5 + $0x70] sm:$0xff]
  %v2301 = vld [vmem:[%s5 + $0x78] sm:$0xff]
  %v2302 = vld [vmem:[%s5 + $0x80] sm:$0xff]
  %v2303 = vld [vmem:[%s5 + $0x88] sm:$0xff]
  %v2304 = vld [vmem:[%s5 + $0x90] sm:$0xff]
  %v2305 = vld [vmem:[%s5 + $0x98] sm:$0xff]
  %v2306 = vld [vmem:[%s5 + $0xa0] sm:$0xff]
  %v2307 = vld [vmem:[%s5 + $0xa8] sm:$0xff]
  %v2308 = vld [vmem:[%s5 + $0xb0] sm:$0xff]
  %v2309 = vld [vmem:[%s5 + $0xb8] sm:$0xff]
  %v2310 = vld [vmem:[%s5 + $0xc0] sm:$0xff]
  %v2311 = vld [vmem:[%s5 + $0xc8] sm:$0xff]
  %v2312 = vld [vmem:[%s5 + $0xd0] sm:$0xff]
  %v2313 = vld [vmem:[%s5 + $0xd8] sm:$0xff]
  %v2314 = vld [vmem:[%s5 + $0xe0] sm:$0xff]
  %v2315 = vld [vmem:[%s5 + $0xe8] sm:$0xff]
  %v2316 = vld [vmem:[%s5 + $0xf0] sm:$0xff]
  %v2317 = vld [vmem:[%s5 + $0xf8] sm:$0xff]
  %v2318 = vld [vmem:[%s5 + $0x100] sm:$0xff]
  %v2319 = vld [vmem:[%s5 + $0x108] sm:$0xff]
  %v2320 = vld [vmem:[%s5 + $0x110] sm:$0xff]
  %v2321 = vld [vmem:[%s5 + $0x118] sm:$0xff]
  %v2322 = vld [vmem:[%s5 + $0x120] sm:$0xff]
  %v2323 = vld [vmem:[%s5 + $0x128] sm:$0xff]
  %v2324 = vld [vmem:[%s5 + $0x130] sm:$0xff]
  %v2325 = vld [vmem:[%s5 + $0x138] sm:$0xff]
  %v2326 = vld [vmem:[%s5 + $0x140] sm:$0xff]
  %v2327 = vld [vmem:[%s5 + $0x148] sm:$0xff]
  %v2328 = vld [vmem:[%s5 + $0x150] sm:$0xff]
  %v2329 = vld [vmem:[%s5 + $0x158] sm:$0xff]
  %v2330 = vld [vmem:[%s5 + $0x160] sm:$0xff]
  %v2331 = vld [vmem:[%s5 + $0x168] sm:$0xff]
  %v2332 = vld [vmem:[%s5 + $0x170] sm:$0xff]
  %v2333 = vld [vmem:[%s5 + $0x178] sm:$0xff]
  %v2334 = vld [vmem:[%s5 + $0x180] sm:$0xff]
  %v2335 = vld [vmem:[%s5 + $0x188] sm:$0xff]
  %v2336 = vld [vmem:[%s5 + $0x190] sm:$0xff]
  %v2337 = vld [vmem:[%s5 + $0x198] sm:$0xff]
  %v2338 = vld [vmem:[%s5 + $0x1a0] sm:$0xff]
  %v2339 = vld [vmem:[%s5 + $0x1a8] sm:$0xff]
  %v2340 = vld [vmem:[%s5 + $0x1b0] sm:$0xff]
  %v2341 = vld [vmem:[%s5 + $0x1b8] sm:$0xff]
  %v2342 = vld [vmem:[%s5 + $0x1c0] sm:$0xff]
  %v2343 = vld [vmem:[%s5 + $0x1c8] sm:$0xff]
  %v2344 = vld [vmem:[%s5 + $0x1d0] sm:$0xff]
  %v2345 = vld [vmem:[%s5 + $0x1d8] sm:$0xff]
  %v2346 = vld [vmem:[%s5 + $0x1e0] sm:$0xff]
  %v2347 = vld [vmem:[%s5 + $0x1e8] sm:$0xff]
  %v2348 = vld [vmem:[%s5 + $0x1f0] sm:$0xff]
  %v2349 = vld [vmem:[%s5 + $0x1f8] sm:$0xff]
  %v2350 = vpack.c.bf16 %v2287, %v2286
  %v2351 = vpack.c.bf16 %v2289, %v2288
  %v2352 = vpack.c.bf16 %v2291, %v2290
  %v2353 = vpack.c.bf16 %v2293, %v2292
  %v2354 = vpack.c.bf16 %v2295, %v2294
  %v2355 = vpack.c.bf16 %v2297, %v2296
  %v2356 = vpack.c.bf16 %v2299, %v2298
  %v2357 = vpack.c.bf16 %v2301, %v2300
  %v2358 = vpack.c.bf16 %v2303, %v2302
  %v2359 = vpack.c.bf16 %v2305, %v2304
  %v2360 = vpack.c.bf16 %v2307, %v2306
  %v2361 = vpack.c.bf16 %v2309, %v2308
  %v2362 = vpack.c.bf16 %v2311, %v2310
  %v2363 = vpack.c.bf16 %v2313, %v2312
  %v2364 = vpack.c.bf16 %v2315, %v2314
  %v2365 = vpack.c.bf16 %v2317, %v2316
  %v2366 = vpack.c.bf16 %v2319, %v2318
  %v2367 = vpack.c.bf16 %v2321, %v2320
  %v2368 = vpack.c.bf16 %v2323, %v2322
  %v2369 = vpack.c.bf16 %v2325, %v2324
  %v2370 = vpack.c.bf16 %v2327, %v2326
  %v2371 = vpack.c.bf16 %v2329, %v2328
  %v2372 = vpack.c.bf16 %v2331, %v2330
  %v2373 = vpack.c.bf16 %v2333, %v2332
  %v2374 = vpack.c.bf16 %v2335, %v2334
  %v2375 = vpack.c.bf16 %v2337, %v2336
  %v2376 = vpack.c.bf16 %v2339, %v2338
  %v2377 = vpack.c.bf16 %v2341, %v2340
  %v2378 = vpack.c.bf16 %v2343, %v2342
  %v2379 = vpack.c.bf16 %v2345, %v2344
  %v2380 = vpack.c.bf16 %v2347, %v2346
  %v2381 = vpack.c.bf16 %v2349, %v2348
  %v2382 = vld [vmem:[%s6] sm:$0x1]
  %v2384 = vlaneseq
  %v2385 = vshrl.u32 %v2384, 7
  %v2386 = vsub.s32 0, %v2385
  %v2387 = vrot.slane %v2382, %v2386
  %2389 = vmatprep.subr.bf16.mxu0 0
  %2390 = vmatpush1.bf16.msra.mxu0 %v2357
  %2391 = vmatprep.subr.bf16.mxu0 0
  %2392 = vmatpush1.bf16.msra.mxu0 %v2356
  %2393 = vmatprep.subr.bf16.mxu0 0
  %2394 = vmatpush1.bf16.msra.mxu0 %v2355
  %2395 = vmatprep.subr.bf16.mxu0 0
  %2396 = vmatpush1.bf16.msra.mxu0 %v2354
  %2397 = vmatprep.subr.bf16.mxu0 0
  %2398 = vmatpush1.bf16.msra.mxu0 %v2353
  %2399 = vmatprep.subr.bf16.mxu0 0
  %2400 = vmatpush1.bf16.msra.mxu0 %v2352
  %2401 = vmatprep.subr.bf16.mxu0 0
  %2402 = vmatpush1.bf16.msra.mxu0 %v2351
  %2403 = vmatprep.subr.bf16.mxu0 0
  %2404 = vmatpush1.bf16.msra.mxu0 %v2350
  %2405 = vmatprep.subr.bf16.mxu0 0
  %2406 = vmatpush2.bf16.msra.mxu0 %v2365
  %2407 = vmatprep.subr.bf16.mxu0 0
  %2408 = vmatpush2.bf16.msra.mxu0 %v2364
  %2409 = vmatprep.subr.bf16.mxu0 0
  %2410 = vmatpush2.bf16.msra.mxu0 %v2363
  %2411 = vmatprep.subr.bf16.mxu0 0
  %2412 = vmatpush2.bf16.msra.mxu0 %v2362
  %2413 = vmatprep.subr.bf16.mxu0 0
  %2414 = vmatpush2.bf16.msra.mxu0 %v2361
  %2415 = vmatprep.subr.bf16.mxu0 0
  %2416 = vmatpush2.bf16.msra.mxu0 %v2360
  %2417 = vmatprep.subr.bf16.mxu0 0
  %2418 = vmatpush2.bf16.msra.mxu0 %v2359
  %2419 = vmatprep.subr.bf16.mxu0 0
  %2420 = vmatpush2.bf16.msra.mxu0 %v2358
  %2421 = vmatprep.mubr.bf16.mxu0 %v2271
  %2422 = vmatmul.mubr.bf16.gmra.mxu0 %v2270
  %v2423 = vpop.f32.mrf.mxu0
  %v2424 = vadd.f32 %v2387, %v2423
  %v2425 = vpop.f32.mrf.mxu0
  %v2426 = vpop.f32.mrf.mxu0
  %v2427 = vadd.f32 %v2387, %v2426
  %v2428 = vpop.f32.mrf.mxu0
  %2429 = vmatprep.mubr.bf16.mxu0 %v2275
  %2430 = vmatmul.mubr.bf16.gmra.mxu0 %v2274
  %v2431 = vpop.f32.mrf.mxu0
  %v2432 = vadd.f32 %v2387, %v2431
  %v2433 = vpop.f32.mrf.mxu0
  %v2434 = vpop.f32.mrf.mxu0
  %v2435 = vadd.f32 %v2387, %v2434
  %v2436 = vpop.f32.mrf.mxu0
  %2437 = vmatprep.mubr.bf16.mxu0 %v2279
  %2438 = vmatmul.mubr.bf16.gmra.mxu0 %v2278
  %v2439 = vpop.f32.mrf.mxu0
  %v2440 = vadd.f32 %v2387, %v2439
  %v2441 = vpop.f32.mrf.mxu0
  %v2442 = vpop.f32.mrf.mxu0
  %v2443 = vadd.f32 %v2387, %v2442
  %v2444 = vpop.f32.mrf.mxu0
  %2445 = vmatprep.mubr.bf16.mxu0 %v2283
  %2446 = vmatmul.mubr.bf16.gmra.mxu0 %v2282
  %v2447 = vpop.f32.mrf.mxu0
  %v2448 = vadd.f32 %v2387, %v2447
  %v2449 = vpop.f32.mrf.mxu0
  %v2450 = vpop.f32.mrf.mxu0
  %v2451 = vadd.f32 %v2387, %v2450
  %v2452 = vpop.f32.mrf.mxu0
  %2453 = vdwg.mxu0
  %2454 = vmatprep.subr.bf16.mxu0 0
  %2455 = vmatpush1.bf16.msra.mxu0 %v2373
  %2456 = vmatprep.subr.bf16.mxu0 0
  %2457 = vmatpush1.bf16.msra.mxu0 %v2372
  %2458 = vmatprep.subr.bf16.mxu0 0
  %2459 = vmatpush1.bf16.msra.mxu0 %v2371
  %2460 = vmatprep.subr.bf16.mxu0 0
  %2461 = vmatpush1.bf16.msra.mxu0 %v2370
  %2462 = vmatprep.subr.bf16.mxu0 0
  %2463 = vmatpush1.bf16.msra.mxu0 %v2369
  %2464 = vmatprep.subr.bf16.mxu0 0
  %2465 = vmatpush1.bf16.msra.mxu0 %v2368
  %2466 = vmatprep.subr.bf16.mxu0 0
  %2467 = vmatpush1.bf16.msra.mxu0 %v2367
  %2468 = vmatprep.subr.bf16.mxu0 0
  %2469 = vmatpush1.bf16.msra.mxu0 %v2366
  %2470 = vmatprep.subr.bf16.mxu0 0
  %2471 = vmatpush2.bf16.msra.mxu0 %v2381
  %2472 = vmatprep.subr.bf16.mxu0 0
  %2473 = vmatpush2.bf16.msra.mxu0 %v2380
  %2474 = vmatprep.subr.bf16.mxu0 0
  %2475 = vmatpush2.bf16.msra.mxu0 %v2379
  %2476 = vmatprep.subr.bf16.mxu0 0
  %2477 = vmatpush2.bf16.msra.mxu0 %v2378
  %2478 = vmatprep.subr.bf16.mxu0 0
  %2479 = vmatpush2.bf16.msra.mxu0 %v2377
  %2480 = vmatprep.subr.bf16.mxu0 0
  %2481 = vmatpush2.bf16.msra.mxu0 %v2376
  %2482 = vmatprep.subr.bf16.mxu0 0
  %2483 = vmatpush2.bf16.msra.mxu0 %v2375
  %2484 = vmatprep.subr.bf16.mxu0 0
  %2485 = vmatpush2.bf16.msra.mxu0 %v2374
  %2486 = vmatprep.mubr.bf16.mxu0 %v2273
  %2487 = vmatmul.mubr.bf16.gmra.mxu0 %v2272
  %v2488 = vpop.f32.mrf.mxu0
  %v2489 = vadd.f32 %v2424, %v2488
  %v2490 = vpop.f32.mrf.mxu0
  %v2491 = vpop.f32.mrf.mxu0
  %v2492 = vadd.f32 %v2427, %v2491
  %v2493 = vpop.f32.mrf.mxu0
  %2494 = vmatprep.mubr.bf16.mxu0 %v2277
  %2495 = vmatmul.mubr.bf16.gmra.mxu0 %v2276
  %v2496 = vpop.f32.mrf.mxu0
  %v2497 = vadd.f32 %v2432, %v2496
  %v2498 = vpop.f32.mrf.mxu0
  %v2499 = vpop.f32.mrf.mxu0
  %v2500 = vadd.f32 %v2435, %v2499
  %v2501 = vpop.f32.mrf.mxu0
  %2502 = vmatprep.mubr.bf16.mxu0 %v2281
  %2503 = vmatmul.mubr.bf16.gmra.mxu0 %v2280
  %v2504 = vpop.f32.mrf.mxu0
  %v2505 = vadd.f32 %v2440, %v2504
  %v2506 = vpop.f32.mrf.mxu0
  %v2507 = vpop.f32.mrf.mxu0
  %v2508 = vadd.f32 %v2443, %v2507
  %v2509 = vpop.f32.mrf.mxu0
  %2510 = vmatprep.mubr.bf16.mxu0 %v2285
  %2511 = vmatmul.mubr.bf16.gmra.mxu0 %v2284
  %v2512 = vpop.f32.mrf.mxu0
  %v2513 = vadd.f32 %v2448, %v2512
  %v2514 = vpop.f32.mrf.mxu0
  %v2515 = vpop.f32.mrf.mxu0
  %v2516 = vadd.f32 %v2451, %v2515
  %v2517 = vpop.f32.mrf.mxu0
  %2518 = vdwg.mxu0
  %v2519 = vmax.f32 %v2489, 0.0
  %v2520 = vmax.f32 %v2492, 0.0
  %v2521 = vmax.f32 %v2497, 0.0
  %v2522 = vmax.f32 %v2500, 0.0
  %v2523 = vmax.f32 %v2505, 0.0
  %v2524 = vmax.f32 %v2508, 0.0
  %v2525 = vmax.f32 %v2513, 0.0
  %v2526 = vmax.f32 %v2516, 0.0
  %v2527 = vpack.c.bf16 %v2520, %v2519
  %v2528 = vpack.c.bf16 %v2522, %v2521
  %v2529 = vpack.c.bf16 %v2524, %v2523
  %v2530 = vpack.c.bf16 %v2526, %v2525
  %v2531 = vld [vmem:[%s7] sm:$0xff]
  %v2532 = vld [vmem:[%s7 + $0x8] sm:$0xff]
  %v2533 = vld [vmem:[%s7 + $0x10] sm:$0xff]
  %v2534 = vld [vmem:[%s7 + $0x18] sm:$0xff]
  %v2535 = vld [vmem:[%s7 + $0x20] sm:$0xff]
  %v2536 = vld [vmem:[%s7 + $0x28] sm:$0xff]
  %v2537 = vld [vmem:[%s7 + $0x30] sm:$0xff]
  %v2538 = vld [vmem:[%s7 + $0x38] sm:$0xff]
  %v2539 = vpack.c.bf16 %v2532, %v2531
  %v2540 = vpack.c.bf16 %v2534, %v2533
  %v2541 = vpack.c.bf16 %v2536, %v2535
  %v2542 = vpack.c.bf16 %v2538, %v2537
  %v2543 = vld [vmem:[%s8] sm:$0x1]
  %v2545 = vlaneseq
  %v2546 = vshrl.u32 %v2545, 7
  %v2547 = vsub.s32 0, %v2546
  %v2548 = vrot.slane %v2543, %v2547
  %vm2550 = vcmask 523264
  %v2552 = vsel %vm2550, %v2527, 0
  %v2555 = vsel %vm2550, %v2528, 0
  %v2558 = vsel %vm2550, %v2529, 0
  %v2561 = vsel %vm2550, %v2530, 0
  %2563 = vmatprep.subr.bf16.mxu0 0
  %2564 = vmatpush1.bf16.msra.mxu0 0
  %2565 = vmatprep.subr.bf16.mxu0 0
  %2566 = vmatpush1.bf16.msra.mxu0 0
  %2567 = vmatprep.subr.bf16.mxu0 0
  %2568 = vmatpush1.bf16.msra.mxu0 0
  %2569 = vmatprep.subr.bf16.mxu0 0
  %2570 = vmatpush1.bf16.msra.mxu0 0
  %2571 = vmatprep.subr.bf16.mxu0 0
  %2572 = vmatpush1.bf16.msra.mxu0 %v2542
  %2573 = vmatprep.subr.bf16.mxu0 0
  %2574 = vmatpush1.bf16.msra.mxu0 %v2541
  %2575 = vmatprep.subr.bf16.mxu0 0
  %2576 = vmatpush1.bf16.msra.mxu0 %v2540
  %2577 = vmatprep.subr.bf16.mxu0 0
  %2578 = vmatpush1.bf16.msra.mxu0 %v2539
  %2579 = vmatprep.subr.bf16.mxu0 0
  %2580 = vmatpush2.bf16.msra.mxu0 0
  %2581 = vmatprep.subr.bf16.mxu0 0
  %2582 = vmatpush2.bf16.msra.mxu0 0
  %2583 = vmatprep.subr.bf16.mxu0 0
  %2584 = vmatpush2.bf16.msra.mxu0 0
  %2585 = vmatprep.subr.bf16.mxu0 0
  %2586 = vmatpush2.bf16.msra.mxu0 0
  %2587 = vmatprep.subr.bf16.mxu0 0
  %2588 = vmatpush2.bf16.msra.mxu0 0
  %2589 = vmatprep.subr.bf16.mxu0 0
  %2590 = vmatpush2.bf16.msra.mxu0 0
  %2591 = vmatprep.subr.bf16.mxu0 0
  %2592 = vmatpush2.bf16.msra.mxu0 0
  %2593 = vmatprep.subr.bf16.mxu0 0
  %2594 = vmatpush2.bf16.msra.mxu0 0
  %2595 = vmatprep.mubr.bf16.mxu0 0
  %2596 = vmatmul.mubr.bf16.gmra.mxu0 %v2552
  %v2597 = vpop.f32.mrf.mxu0
  %v2598 = vadd.f32 %v2548, %v2597
  %v2599 = vpop.f32.mrf.mxu0
  %v2600 = vpop.f32.mrf.mxu0
  %v2601 = vadd.f32 %v2548, %v2600
  %v2602 = vpop.f32.mrf.mxu0
  %2603 = vmatprep.mubr.bf16.mxu0 0
  %2604 = vmatmul.mubr.bf16.gmra.mxu0 %v2555
  %v2605 = vpop.f32.mrf.mxu0
  %v2606 = vadd.f32 %v2548, %v2605
  %v2607 = vpop.f32.mrf.mxu0
  %v2608 = vpop.f32.mrf.mxu0
  %v2609 = vadd.f32 %v2548, %v2608
  %v2610 = vpop.f32.mrf.mxu0
  %2611 = vmatprep.mubr.bf16.mxu0 0
  %2612 = vmatmul.mubr.bf16.gmra.mxu0 %v2558
  %v2613 = vpop.f32.mrf.mxu0
  %v2614 = vadd.f32 %v2548, %v2613
  %v2615 = vpop.f32.mrf.mxu0
  %v2616 = vpop.f32.mrf.mxu0
  %v2617 = vadd.f32 %v2548, %v2616
  %v2618 = vpop.f32.mrf.mxu0
  %2619 = vmatprep.mubr.bf16.mxu0 0
  %2620 = vmatmul.mubr.bf16.gmra.mxu0 %v2561
  %v2621 = vpop.f32.mrf.mxu0
  %v2622 = vadd.f32 %v2548, %v2621
  %v2623 = vpop.f32.mrf.mxu0
  %v2624 = vpop.f32.mrf.mxu0
  %v2625 = vadd.f32 %v2548, %v2624
  %v2626 = vpop.f32.mrf.mxu0
  %2627 = vdwg.mxu0
  %2628 = vst [vmem:[%s9] sm:$0xff] %v2598
  %2629 = vst [vmem:[%s9 + $0x8] sm:$0xff] %v2601
  %2630 = vst [vmem:[%s9 + $0x10] sm:$0xff] %v2606
  %2631 = vst [vmem:[%s9 + $0x18] sm:$0xff] %v2609
  %2632 = vst [vmem:[%s9 + $0x20] sm:$0xff] %v2614
  %2633 = vst [vmem:[%s9 + $0x28] sm:$0xff] %v2617
  %2634 = vst [vmem:[%s9 + $0x30] sm:$0xff] %v2622
  %2635 = vst [vmem:[%s9 + $0x38] sm:$0xff] %v2625
  // Predicated region
  $region38: #{simple_cnn_forward.1} parent=0 // pred_check
    _
  $region39: #{simple_cnn_forward.1} parent=0 // pred_check_branch
    %2637 = sbr.rel (0) target = $region41
  $region40: #{simple_cnn_forward.1} parent=0 // pred_region
    _
  $region41: #{simple_cnn_forward.1} parent=0 // pred_fallthru
    _
  // Predicated region
  $region42: #{simple_cnn_forward.1} parent=0 // pred_check
    _
  $region43: #{simple_cnn_forward.1} parent=0 // pred_check_branch
    %2639 = sbr.rel (0) target = $region45
  $region44: #{simple_cnn_forward.1} parent=0 // pred_region
    _
  $region45: #{simple_cnn_forward.1} parent=0 // pred_fallthru
    _

</llo_original>
